<compile_context>
chip_gen: v7x
topology: tpu7x:2x2x1
jax: 0.10.0
libtpu: 0.0.40
codegen_flags: <defaults>
</compile_context>

<pallas_src>
import functools
import math

import jax
import jax.numpy as jnp
from jax.experimental import pallas as pl
from jax.experimental.pallas import tpu as pltpu


def _round_up(x, m):
    return ((x + m - 1) // m) * m


def _layer_norm(x, gamma, beta, eps=1e-5):
    # torch.nn.LayerNorm: biased variance, eps inside the sqrt, default eps=1e-5
    mu = jnp.mean(x, axis=-1, keepdims=True)
    var = jnp.mean(jnp.square(x - mu), axis=-1, keepdims=True)
    return (x - mu) * jax.lax.rsqrt(var + eps) * gamma + beta


# ---------------------------------------------------------------------------
# Kernel
# ---------------------------------------------------------------------------
def attention_actor_kernel(
    x_ref,       # (T, in_dim)   T = B_TILE * n_agents tokens
    mask_ref,    # (T, T)        additive block-diagonal agent mask
    we_ref,      # (in_dim, H)   embed weight
    wqkv_ref,    # (H, 3*S)      fused q|k|v weight, S = round_up(H, 128), zero-padded
    bqkv_ref,    # (1, 3*S)      fused q|k|v bias, zero-padded
    wo_ref,      # (S, H)        attention output projection, rows [H:S] zero
    whh_ref,     # (3, H, H)     [w1, w2, wf1]
    vecs_ref,    # (9, H)        [be, bo, ln1g, ln1b, b1, b2, ln2g, ln2b, bf1]
    wf2_ref,     # (H, out_pad)  final weight, zero-padded to 128 lanes
    bf2_ref,     # (1, out_pad)
    out_ref,     # (T, out_pad)
    *, hidden_size, qkv_stride,
):
    H = hidden_size
    S = qkv_stride
    f32 = jnp.float32

    x = x_ref[...]                               # (T, Din)
    vecs = vecs_ref[...]                         # (9, H)

    def row(i):                                  # (1, H) bias / LN row
        return vecs[i:i + 1, :]

    # ---- embed + ReLU (per-token Linear on the flattened slab) ----
    e = jnp.dot(x, we_ref[...], preferred_element_type=f32) + row(0)
    e = jnp.maximum(e, 0.0)                      # (T, H)

    # ---- fused q/k/v projection: one MXU launch, full 128-lane band slices ----
    qkv = jnp.dot(e, wqkv_ref[...], preferred_element_type=f32) + bqkv_ref[...]
    q = qkv[:, 0:S]          # (T, S); columns [H:S] are exactly zero
    k = qkv[:, S:2 * S]
    v = qkv[:, 2 * S:3 * S]

    # ---- single-head attention over agents as one dense masked matmul ----
    # contract last dims directly (no explicit transpose of k); zero-padded
    # columns contribute nothing, so scores are exact.
    scores = jax.lax.dot_general(
        q, k, (((1,), (1,)), ((), ())), preferred_element_type=f32)   # (T, T)
    scores = scores * (1.0 / math.sqrt(float(H))) + mask_ref[...]
    scores = scores - jnp.max(scores, axis=-1, keepdims=True)
    p = jnp.exp(scores)
    p = p * pl.reciprocal(jnp.sum(p, axis=-1, keepdims=True), approx=True)
    attn = jnp.dot(p, v, preferred_element_type=f32)                  # (T, S)

    # output projection (padded rows of wo are zero) + residual + LayerNorm
    o = jnp.dot(attn, wo_ref[...], preferred_element_type=f32) + row(1)   # (T, H)
    y = _layer_norm(o + e, row(2), row(3))

    # ---- position-wise FFN + residual + LayerNorm ----
    f = jnp.dot(y, whh_ref[0], preferred_element_type=f32) + row(4)
    f = jnp.maximum(f, 0.0)
    f = jnp.dot(f, whh_ref[1], preferred_element_type=f32) + row(5)
    z = _layer_norm(f + y, row(6), row(7))

    # outer ReLU on the attention-stack output
    a = jnp.maximum(z, 0.0)

    # ---- feedforward_model: Linear(H,H) -> ReLU -> Linear(H,out) ----
    h = jnp.dot(a, whh_ref[2], preferred_element_type=f32) + row(8)
    h = jnp.maximum(h, 0.0)
    logits = jnp.dot(h, wf2_ref[...], preferred_element_type=f32) + bf2_ref[...]
    out_ref[...] = logits.astype(out_ref.dtype)


# ---------------------------------------------------------------------------
# Parameter handling
# ---------------------------------------------------------------------------
def init_params(key, in_dim, hidden, out_dim):
    """Deterministic synthetic parameter init (shapes match the torch module).

    NOTE: biases are zero-initialized (torch Linear uses uniform bias init);
    fine for synthetic testing, not a bit-level match of torch's init.
    """
    keys = jax.random.split(key, 16)
    kit = iter(keys)

    def lin(k, fan_in, fan_out):
        w = 0.1 * jax.random.normal(k, (fan_in, fan_out), jnp.float32)
        b = jnp.zeros((1, fan_out), jnp.float32)
        return w, b

    p = {}
    p["we"], p["be"] = lin(next(kit), in_dim, hidden)
    p["wq"], p["bq"] = lin(next(kit), hidden, hidden)
    p["wk"], p["bk"] = lin(next(kit), hidden, hidden)
    p["wv"], p["bv"] = lin(next(kit), hidden, hidden)
    p["wo"], p["bo"] = lin(next(kit), hidden, hidden)
    p["ln1g"] = jnp.ones((1, hidden), jnp.float32)
    p["ln1b"] = jnp.zeros((1, hidden), jnp.float32)
    p["w1"], p["b1"] = lin(next(kit), hidden, hidden)
    p["w2"], p["b2"] = lin(next(kit), hidden, hidden)
    p["ln2g"] = jnp.ones((1, hidden), jnp.float32)
    p["ln2b"] = jnp.zeros((1, hidden), jnp.float32)
    p["wf1"], p["bf1"] = lin(next(kit), hidden, hidden)
    p["wf2"], p["bf2"] = lin(next(kit), hidden, out_dim)
    return p


_VEC_ROWS = ("be", "bo", "ln1g", "ln1b", "b1", "b2", "ln2g", "ln2b", "bf1")


def _pack_params(params):
    """Pack the 22 torch-shaped parameters into 8 contiguous, lane-aligned slabs."""
    H = params["we"].shape[1]
    out_dim = params["wf2"].shape[1]
    S = _round_up(H, 128)               # q/k/v column bands, full 128-lane width
    out_pad = _round_up(out_dim, 128)   # lane-dense logits store

    wqkv = jnp.zeros((H, 3 * S), jnp.float32)
    wqkv = wqkv.at[:, 0:H].set(params["wq"])
    wqkv = wqkv.at[:, S:S + H].set(params["wk"])
    wqkv = wqkv.at[:, 2 * S:2 * S + H].set(params["wv"])

    bqkv = jnp.zeros((1, 3 * S), jnp.float32)
    bqkv = bqkv.at[:, 0:H].set(params["bq"].reshape(1, H))
    bqkv = bqkv.at[:, S:S + H].set(params["bk"].reshape(1, H))
    bqkv = bqkv.at[:, 2 * S:2 * S + H].set(params["bv"].reshape(1, H))

    wo_pad = jnp.zeros((S, H), jnp.float32).at[:H, :].set(params["wo"])

    whh = jnp.stack([params["w1"], params["w2"], params["wf1"]], axis=0)

    vecs = jnp.concatenate(
        [params[name].reshape(1, H) for name in _VEC_ROWS], axis=0)

    wf2p = jnp.zeros((H, out_pad), jnp.float32).at[:, :out_dim].set(params["wf2"])
    bf2p = jnp.zeros((1, out_pad), jnp.float32).at[:, :out_dim].set(
        params["bf2"].reshape(1, out_dim))

    return params["we"], wqkv, bqkv, wo_pad, whh, vecs, wf2p, bf2p, S, out_pad


def _choose_batch_tile(B, n_agents, target_tokens=256):
    """Pick B_TILE minimizing batch padding for ~target_tokens per grid step."""
    total = B * n_agents
    if total <= target_tokens:
        return B                        # single step; block == full array is legal
    n_steps = -(-total // target_tokens)
    bt = -(-B // n_steps)               # minimal tile for this many steps
    while (bt * n_agents) % 8 != 0:     # keep flattened token rows sublane-dense
        bt += 1
    return bt


# ---------------------------------------------------------------------------
# Wrapper
# ---------------------------------------------------------------------------
def attention_actor_forward(state_features, params, sample_key, target_tokens=256):
    *batch_shape, n_agents, in_dim = state_features.shape
    hidden = params["we"].shape[1]
    out_dim = params["wf2"].shape[1]

    B = 1
    for d in batch_shape:
        B *= int(d)

    bt = _choose_batch_tile(B, n_agents, target_tokens)
    n_steps = -(-B // bt)              # cdiv
    B_pad = n_steps * bt
    T = bt * n_agents                  # tokens per grid step

    x = state_features.reshape(B, n_agents, in_dim).astype(jnp.float32)
    if B_pad != B:
        pad = jnp.zeros((B_pad - B, n_agents, in_dim), jnp.float32)
        x = jnp.concatenate([x, pad], axis=0)
    x2d = x.reshape(B_pad * n_agents, in_dim)

    (we, wqkv, bqkv, wo_pad, whh, vecs, wf2p, bf2p,
     qkv_stride, out_pad) = _pack_params(params)

    # Block-diagonal additive mask: agent i attends only within its own batch
    # element.  Same for every grid step, so Pallas fetches it once.
    gid = jnp.arange(T, dtype=jnp.int32) // n_agents
    mask = jnp.where(gid[:, None] == gid[None, :], 0.0, -1e30).astype(jnp.float32)

    kernel = functools.partial(
        attention_actor_kernel, hidden_size=hidden, qkv_stride=qkv_stride)

    in_specs = [
        pl.BlockSpec((T, in_dim), lambda b: (b, 0)),       # tokens slab
        pl.BlockSpec((T, T), lambda b: (0, 0)),            # agent mask (shared)
        pl.BlockSpec(we.shape, lambda b: (0, 0)),
        pl.BlockSpec(wqkv.shape, lambda b: (0, 0)),
        pl.BlockSpec(bqkv.shape, lambda b: (0, 0)),
        pl.BlockSpec(wo_pad.shape, lambda b: (0, 0)),
        pl.BlockSpec(whh.shape, lambda b: (0, 0, 0)),
        pl.BlockSpec(vecs.shape, lambda b: (0, 0)),
        pl.BlockSpec(wf2p.shape, lambda b: (0, 0)),
        pl.BlockSpec(bf2p.shape, lambda b: (0, 0)),
    ]
    out_spec = pl.BlockSpec((T, out_pad), lambda b: (b, 0))

    logits_padded = pl.pallas_call(
        kernel,
        grid=(n_steps,),
        in_specs=in_specs,
        out_specs=out_spec,
        out_shape=jax.ShapeDtypeStruct((B_pad * n_agents, out_pad), jnp.float32),
        compiler_params=pltpu.CompilerParams(
            dimension_semantics=("parallel",)),   # independent batch slabs
    )(x2d, mask, we, wqkv, bqkv, wo_pad, whh, vecs, wf2p, bf2p)

    logits = logits_padded[: B * n_agents, :out_dim]
    logits = logits.reshape(*batch_shape, n_agents, out_dim)

    # OneHotCategorical(logits).sample() — stochastic, done in plain JAX.
    # TODO(synk): torch RNG stream cannot be bit-matched; distribution is identical.
    idx = jax.random.categorical(sample_key, logits, axis=-1)
    action = jax.nn.one_hot(idx, out_dim, dtype=logits.dtype)
    return action, logits


# ---------------------------------------------------------------------------
# Pure-JAX reference (for correctness check)
# ---------------------------------------------------------------------------
def reference_logits(state_features, params):
    *batch_shape, n_agents, in_dim = state_features.shape
    H = params["we"].shape[1]
    out_dim = params["wf2"].shape[1]
    x = state_features.reshape(-1, n_agents, in_dim).astype(jnp.float32)

    e = jax.nn.relu(x @ params["we"] + params["be"])
    q = e @ params["wq"] + params["bq"]
    k = e @ params["wk"] + params["bk"]
    v = e @ params["wv"] + params["bv"]
    scores = jnp.einsum("bnh,bmh->bnm", q, k) / math.sqrt(float(H))
    p = jax.nn.softmax(scores, axis=-1)
    attn = jnp.einsum("bnm,bmh->bnh", p, v)
    o = attn @ params["wo"] + params["bo"]
    y = _layer_norm(o + e, params["ln1g"], params["ln1b"])
    f = jax.nn.relu(y @ params["w1"] + params["b1"]) @ params["w2"] + params["b2"]
    z = _layer_norm(f + y, params["ln2g"], params["ln2b"])
    a = jax.nn.relu(z)
    h = jax.nn.relu(a @ params["wf1"] + params["bf1"])
    logits = h @ params["wf2"] + params["bf2"]
    return logits.reshape(*batch_shape, n_agents, out_dim)


# ---------------------------------------------------------------------------
if __name__ == "__main__":
    in_dim, hidden, out_dim = 16, 32, 5
    batch_dims, n_agents = (2, 3), 4

    root = jax.random.PRNGKey(0)
    k_param, k_data1, k_samp1, k_data2, k_samp2 = jax.random.split(root, 5)

    params = init_params(k_param, in_dim, hidden, out_dim)

    # --- case 1: small batch (single grid step, full-array blocks) ---
    x1 = jax.random.normal(k_data1, (*batch_dims, n_agents, in_dim), jnp.float32)
    action1, logits1 = attention_actor_forward(x1, params, k_samp1)
    jax.block_until_ready((action1, logits1))

    ref1 = reference_logits(x1, params)
    err1 = float(jnp.max(jnp.abs(logits1 - ref1)))
    assert err1 < 5e-2, f"logits mismatch (case 1): {err1}"
    assert action1.shape == (*batch_dims, n_agents, out_dim)
    assert logits1.shape == (*batch_dims, n_agents, out_dim)
    assert bool(jnp.all(jnp.sum(action1, axis=-1) == 1.0))

    # --- case 2: larger batch exercising multi-step tiling + minimal padding ---
    x2 = jax.random.normal(k_data2, (10, 7, n_agents, in_dim), jnp.float32)
    action2, logits2 = attention_actor_forward(x2, params, k_samp2)
    jax.block_until_ready((action2, logits2))

    ref2 = reference_logits(x2, params)
    err2 = float(jnp.max(jnp.abs(logits2 - ref2)))
    assert err2 < 5e-2, f"logits mismatch (case 2): {err2}"
    assert action2.shape == (10, 7, n_agents, out_dim)
    assert bool(jnp.all(jnp.sum(action2, axis=-1) == 1.0))

    print("KERNEL_OK")
</pallas_src>

<mosaic_0001>
module attributes {stable_mosaic.version = 11 : i64} {
  func.func @attention_actor_kernel(%arg0: i32, %arg1: memref<24x16xf32, #tpu.memory_space<vmem>>, %arg2: memref<24x24xf32, #tpu.memory_space<vmem>>, %arg3: memref<16x32xf32, #tpu.memory_space<vmem>>, %arg4: memref<32x384xf32, #tpu.memory_space<vmem>>, %arg5: memref<1x384xf32, #tpu.memory_space<vmem>>, %arg6: memref<128x32xf32, #tpu.memory_space<vmem>>, %arg7: memref<3x32x32xf32, #tpu.memory_space<vmem>>, %arg8: memref<9x32xf32, #tpu.memory_space<vmem>>, %arg9: memref<32x128xf32, #tpu.memory_space<vmem>>, %arg10: memref<1x128xf32, #tpu.memory_space<vmem>>, %arg11: memref<24x128xf32, #tpu.memory_space<vmem>>) attributes {dimension_semantics = [#tpu.dimension_semantics<parallel>], iteration_bounds = array<i64: 1>, scalar_prefetch = 0 : i64, scratch_operands = 0 : i64, tpu.core_type = #tpu.core_type<tc>, window_params = [{transform_indices = @transform_0, window_bounds = array<i64: 24, 16>}, {pipeline_mode = #tpu.pipeline_mode<synchronous>, transform_indices = @transform_1, window_bounds = array<i64: 24, 24>}, {pipeline_mode = #tpu.pipeline_mode<synchronous>, transform_indices = @transform_2, window_bounds = array<i64: 16, 32>}, {pipeline_mode = #tpu.pipeline_mode<synchronous>, transform_indices = @transform_3, window_bounds = array<i64: 32, 384>}, {pipeline_mode = #tpu.pipeline_mode<synchronous>, transform_indices = @transform_4, window_bounds = array<i64: 1, 384>}, {pipeline_mode = #tpu.pipeline_mode<synchronous>, transform_indices = @transform_5, window_bounds = array<i64: 128, 32>}, {pipeline_mode = #tpu.pipeline_mode<synchronous>, transform_indices = @transform_6, window_bounds = array<i64: 3, 32, 32>}, {pipeline_mode = #tpu.pipeline_mode<synchronous>, transform_indices = @transform_7, window_bounds = array<i64: 9, 32>}, {pipeline_mode = #tpu.pipeline_mode<synchronous>, transform_indices = @transform_8, window_bounds = array<i64: 32, 128>}, {pipeline_mode = #tpu.pipeline_mode<synchronous>, transform_indices = @transform_9, window_bounds = array<i64: 1, 128>}, {transform_indices = @transform_10, window_bounds = array<i64: 24, 128>}]} {
    %c0 = arith.constant 0 : index
    %c0_0 = arith.constant 0 : index
    %0 = vector.load %arg1[%c0, %c0_0] : memref<24x16xf32, #tpu.memory_space<vmem>>, vector<24x16xf32>
    %c0_1 = arith.constant 0 : index
    %c0_2 = arith.constant 0 : index
    %1 = vector.load %arg8[%c0_1, %c0_2] : memref<9x32xf32, #tpu.memory_space<vmem>>, vector<9x32xf32>
    %c0_3 = arith.constant 0 : index
    %c0_4 = arith.constant 0 : index
    %2 = vector.load %arg3[%c0_3, %c0_4] : memref<16x32xf32, #tpu.memory_space<vmem>>, vector<16x32xf32>
    %cst = arith.constant dense<0.000000e+00> : vector<24x32xf32>
    %3 = tpu.matmul %0, %2, %cst {dimension_numbers = #tpu.dot_dimension_numbers<[1], [0], [0], [1], [0, 0, 1, 1], [], []>} : vector<24x16xf32>, vector<16x32xf32>, vector<24x32xf32> -> vector<24x32xf32>
    %4 = vector.extract_strided_slice %1 {offsets = [0, 0], sizes = [1, 32], strides = [1, 1]} : vector<9x32xf32> to vector<1x32xf32>
    %5 = vector.broadcast %4 : vector<1x32xf32> to vector<24x32xf32>
    %6 = arith.addf %3, %5 : vector<24x32xf32>
    %cst_5 = arith.constant 0.000000e+00 : f32
    %7 = vector.broadcast %cst_5 : f32 to vector<24x32xf32>
    %8 = arith.maximumf %6, %7 : vector<24x32xf32>
    %c0_6 = arith.constant 0 : index
    %c0_7 = arith.constant 0 : index
    %9 = vector.load %arg4[%c0_6, %c0_7] : memref<32x384xf32, #tpu.memory_space<vmem>>, vector<32x384xf32>
    %cst_8 = arith.constant dense<0.000000e+00> : vector<24x384xf32>
    %10 = tpu.matmul %8, %9, %cst_8 {dimension_numbers = #tpu.dot_dimension_numbers<[1], [0], [0], [1], [0, 0, 1, 1], [], []>} : vector<24x32xf32>, vector<32x384xf32>, vector<24x384xf32> -> vector<24x384xf32>
    %c0_9 = arith.constant 0 : index
    %c0_10 = arith.constant 0 : index
    %11 = vector.load %arg5[%c0_9, %c0_10] : memref<1x384xf32, #tpu.memory_space<vmem>>, vector<1x384xf32>
    %12 = vector.broadcast %11 : vector<1x384xf32> to vector<24x384xf32>
    %13 = arith.addf %10, %12 : vector<24x384xf32>
    %14 = vector.extract_strided_slice %13 {offsets = [0, 0], sizes = [24, 128], strides = [1, 1]} : vector<24x384xf32> to vector<24x128xf32>
    %15 = vector.extract_strided_slice %13 {offsets = [0, 128], sizes = [24, 128], strides = [1, 1]} : vector<24x384xf32> to vector<24x128xf32>
    %16 = vector.extract_strided_slice %13 {offsets = [0, 256], sizes = [24, 128], strides = [1, 1]} : vector<24x384xf32> to vector<24x128xf32>
    %cst_11 = arith.constant dense<0.000000e+00> : vector<24x24xf32>
    %17 = tpu.matmul %14, %15, %cst_11 {dimension_numbers = #tpu.dot_dimension_numbers<[1], [1], [0], [0], [0, 0, 1, 0], [], []>} : vector<24x128xf32>, vector<24x128xf32>, vector<24x24xf32> -> vector<24x24xf32>
    %cst_12 = arith.constant 0.176776692 : f32
    %18 = vector.broadcast %cst_12 : f32 to vector<24x24xf32>
    %19 = arith.mulf %17, %18 : vector<24x24xf32>
    %c0_13 = arith.constant 0 : index
    %c0_14 = arith.constant 0 : index
    %20 = vector.load %arg2[%c0_13, %c0_14] : memref<24x24xf32, #tpu.memory_space<vmem>>, vector<24x24xf32>
    %21 = arith.addf %19, %20 : vector<24x24xf32>
    %cst_15 = arith.constant dense<0xFF800000> : vector<24xf32>
    %22 = vector.multi_reduction <maximumf>, %21, %cst_15 [1] : vector<24x24xf32> to vector<24xf32>
    %23 = vector.shape_cast %22 : vector<24xf32> to vector<24x1xf32>
    %24 = vector.broadcast %23 : vector<24x1xf32> to vector<24x24xf32>
    %25 = arith.subf %21, %24 : vector<24x24xf32>
    %26 = math.exp %25 : vector<24x24xf32>
    %cst_16 = arith.constant dense<0.000000e+00> : vector<24xf32>
    %27 = vector.multi_reduction <add>, %26, %cst_16 [1] : vector<24x24xf32> to vector<24xf32>
    %28 = vector.shape_cast %27 : vector<24xf32> to vector<24x1xf32>
    %29 = tpu.reciprocal %28 {approx = true} : vector<24x1xf32> -> vector<24x1xf32>
    %30 = vector.broadcast %29 : vector<24x1xf32> to vector<24x24xf32>
    %31 = arith.mulf %26, %30 : vector<24x24xf32>
    %cst_17 = arith.constant dense<0.000000e+00> : vector<24x128xf32>
    %32 = tpu.matmul %31, %16, %cst_17 {dimension_numbers = #tpu.dot_dimension_numbers<[1], [0], [0], [1], [0, 0, 1, 1], [], []>} : vector<24x24xf32>, vector<24x128xf32>, vector<24x128xf32> -> vector<24x128xf32>
    %c0_18 = arith.constant 0 : index
    %c0_19 = arith.constant 0 : index
    %33 = vector.load %arg6[%c0_18, %c0_19] : memref<128x32xf32, #tpu.memory_space<vmem>>, vector<128x32xf32>
    %cst_20 = arith.constant dense<0.000000e+00> : vector<24x32xf32>
    %34 = tpu.matmul %32, %33, %cst_20 {dimension_numbers = #tpu.dot_dimension_numbers<[1], [0], [0], [1], [0, 0, 1, 1], [], []>} : vector<24x128xf32>, vector<128x32xf32>, vector<24x32xf32> -> vector<24x32xf32>
    %35 = vector.extract_strided_slice %1 {offsets = [1, 0], sizes = [1, 32], strides = [1, 1]} : vector<9x32xf32> to vector<1x32xf32>
    %36 = vector.broadcast %35 : vector<1x32xf32> to vector<24x32xf32>
    %37 = arith.addf %34, %36 : vector<24x32xf32>
    %38 = arith.addf %37, %8 : vector<24x32xf32>
    %39 = vector.extract_strided_slice %1 {offsets = [2, 0], sizes = [1, 32], strides = [1, 1]} : vector<9x32xf32> to vector<1x32xf32>
    %40 = vector.extract_strided_slice %1 {offsets = [3, 0], sizes = [1, 32], strides = [1, 1]} : vector<9x32xf32> to vector<1x32xf32>
    %cst_21 = arith.constant dense<0.000000e+00> : vector<24xf32>
    %41 = vector.multi_reduction <add>, %38, %cst_21 [1] : vector<24x32xf32> to vector<24xf32>
    %42 = vector.shape_cast %41 : vector<24xf32> to vector<24x1xf32>
    %cst_22 = arith.constant 3.200000e+01 : f32
    %43 = vector.broadcast %cst_22 : f32 to vector<24x1xf32>
    %44 = arith.divf %42, %43 : vector<24x1xf32>
    %45 = vector.broadcast %44 : vector<24x1xf32> to vector<24x32xf32>
    %46 = arith.subf %38, %45 : vector<24x32xf32>
    %47 = arith.mulf %46, %46 : vector<24x32xf32>
    %cst_23 = arith.constant dense<0.000000e+00> : vector<24xf32>
    %48 = vector.multi_reduction <add>, %47, %cst_23 [1] : vector<24x32xf32> to vector<24xf32>
    %49 = vector.shape_cast %48 : vector<24xf32> to vector<24x1xf32>
    %cst_24 = arith.constant 3.200000e+01 : f32
    %50 = vector.broadcast %cst_24 : f32 to vector<24x1xf32>
    %51 = arith.divf %49, %50 : vector<24x1xf32>
    %52 = vector.broadcast %44 : vector<24x1xf32> to vector<24x32xf32>
    %53 = arith.subf %38, %52 : vector<24x32xf32>
    %cst_25 = arith.constant 9.99999974E-6 : f32
    %54 = vector.broadcast %cst_25 : f32 to vector<24x1xf32>
    %55 = arith.addf %51, %54 : vector<24x1xf32>
    %56 = math.rsqrt %55 : vector<24x1xf32>
    %57 = vector.broadcast %56 : vector<24x1xf32> to vector<24x32xf32>
    %58 = arith.mulf %53, %57 : vector<24x32xf32>
    %59 = vector.broadcast %39 : vector<1x32xf32> to vector<24x32xf32>
    %60 = arith.mulf %58, %59 : vector<24x32xf32>
    %61 = vector.broadcast %40 : vector<1x32xf32> to vector<24x32xf32>
    %62 = arith.addf %60, %61 : vector<24x32xf32>
    %c0_26 = arith.constant 0 : index
    %c0_27 = arith.constant 0 : index
    %c0_28 = arith.constant 0 : index
    %63 = vector.load %arg7[%c0_26, %c0_27, %c0_28] : memref<3x32x32xf32, #tpu.memory_space<vmem>>, vector<1x32x32xf32>
    %64 = vector.shape_cast %63 : vector<1x32x32xf32> to vector<32x32xf32>
    %cst_29 = arith.constant dense<0.000000e+00> : vector<24x32xf32>
    %65 = tpu.matmul %62, %64, %cst_29 {dimension_numbers = #tpu.dot_dimension_numbers<[1], [0], [0], [1], [0, 0, 1, 1], [], []>} : vector<24x32xf32>, vector<32x32xf32>, vector<24x32xf32> -> vector<24x32xf32>
    %66 = vector.extract_strided_slice %1 {offsets = [4, 0], sizes = [1, 32], strides = [1, 1]} : vector<9x32xf32> to vector<1x32xf32>
    %67 = vector.broadcast %66 : vector<1x32xf32> to vector<24x32xf32>
    %68 = arith.addf %65, %67 : vector<24x32xf32>
    %cst_30 = arith.constant 0.000000e+00 : f32
    %69 = vector.broadcast %cst_30 : f32 to vector<24x32xf32>
    %70 = arith.maximumf %68, %69 : vector<24x32xf32>
    %c1 = arith.constant 1 : index
    %c0_31 = arith.constant 0 : index
    %c0_32 = arith.constant 0 : index
    %71 = vector.load %arg7[%c1, %c0_31, %c0_32] : memref<3x32x32xf32, #tpu.memory_space<vmem>>, vector<1x32x32xf32>
    %72 = vector.shape_cast %71 : vector<1x32x32xf32> to vector<32x32xf32>
    %cst_33 = arith.constant dense<0.000000e+00> : vector<24x32xf32>
    %73 = tpu.matmul %70, %72, %cst_33 {dimension_numbers = #tpu.dot_dimension_numbers<[1], [0], [0], [1], [0, 0, 1, 1], [], []>} : vector<24x32xf32>, vector<32x32xf32>, vector<24x32xf32> -> vector<24x32xf32>
    %74 = vector.extract_strided_slice %1 {offsets = [5, 0], sizes = [1, 32], strides = [1, 1]} : vector<9x32xf32> to vector<1x32xf32>
    %75 = vector.broadcast %74 : vector<1x32xf32> to vector<24x32xf32>
    %76 = arith.addf %73, %75 : vector<24x32xf32>
    %77 = arith.addf %76, %62 : vector<24x32xf32>
    %78 = vector.extract_strided_slice %1 {offsets = [6, 0], sizes = [1, 32], strides = [1, 1]} : vector<9x32xf32> to vector<1x32xf32>
    %79 = vector.extract_strided_slice %1 {offsets = [7, 0], sizes = [1, 32], strides = [1, 1]} : vector<9x32xf32> to vector<1x32xf32>
    %cst_34 = arith.constant dense<0.000000e+00> : vector<24xf32>
    %80 = vector.multi_reduction <add>, %77, %cst_34 [1] : vector<24x32xf32> to vector<24xf32>
    %81 = vector.shape_cast %80 : vector<24xf32> to vector<24x1xf32>
    %cst_35 = arith.constant 3.200000e+01 : f32
    %82 = vector.broadcast %cst_35 : f32 to vector<24x1xf32>
    %83 = arith.divf %81, %82 : vector<24x1xf32>
    %84 = vector.broadcast %83 : vector<24x1xf32> to vector<24x32xf32>
    %85 = arith.subf %77, %84 : vector<24x32xf32>
    %86 = arith.mulf %85, %85 : vector<24x32xf32>
    %cst_36 = arith.constant dense<0.000000e+00> : vector<24xf32>
    %87 = vector.multi_reduction <add>, %86, %cst_36 [1] : vector<24x32xf32> to vector<24xf32>
    %88 = vector.shape_cast %87 : vector<24xf32> to vector<24x1xf32>
    %cst_37 = arith.constant 3.200000e+01 : f32
    %89 = vector.broadcast %cst_37 : f32 to vector<24x1xf32>
    %90 = arith.divf %88, %89 : vector<24x1xf32>
    %91 = vector.broadcast %83 : vector<24x1xf32> to vector<24x32xf32>
    %92 = arith.subf %77, %91 : vector<24x32xf32>
    %cst_38 = arith.constant 9.99999974E-6 : f32
    %93 = vector.broadcast %cst_38 : f32 to vector<24x1xf32>
    %94 = arith.addf %90, %93 : vector<24x1xf32>
    %95 = math.rsqrt %94 : vector<24x1xf32>
    %96 = vector.broadcast %95 : vector<24x1xf32> to vector<24x32xf32>
    %97 = arith.mulf %92, %96 : vector<24x32xf32>
    %98 = vector.broadcast %78 : vector<1x32xf32> to vector<24x32xf32>
    %99 = arith.mulf %97, %98 : vector<24x32xf32>
    %100 = vector.broadcast %79 : vector<1x32xf32> to vector<24x32xf32>
    %101 = arith.addf %99, %100 : vector<24x32xf32>
    %cst_39 = arith.constant 0.000000e+00 : f32
    %102 = vector.broadcast %cst_39 : f32 to vector<24x32xf32>
    %103 = arith.maximumf %101, %102 : vector<24x32xf32>
    %c2 = arith.constant 2 : index
    %c0_40 = arith.constant 0 : index
    %c0_41 = arith.constant 0 : index
    %104 = vector.load %arg7[%c2, %c0_40, %c0_41] : memref<3x32x32xf32, #tpu.memory_space<vmem>>, vector<1x32x32xf32>
    %105 = vector.shape_cast %104 : vector<1x32x32xf32> to vector<32x32xf32>
    %cst_42 = arith.constant dense<0.000000e+00> : vector<24x32xf32>
    %106 = tpu.matmul %103, %105, %cst_42 {dimension_numbers = #tpu.dot_dimension_numbers<[1], [0], [0], [1], [0, 0, 1, 1], [], []>} : vector<24x32xf32>, vector<32x32xf32>, vector<24x32xf32> -> vector<24x32xf32>
    %107 = vector.extract_strided_slice %1 {offsets = [8, 0], sizes = [1, 32], strides = [1, 1]} : vector<9x32xf32> to vector<1x32xf32>
    %108 = vector.broadcast %107 : vector<1x32xf32> to vector<24x32xf32>
    %109 = arith.addf %106, %108 : vector<24x32xf32>
    %cst_43 = arith.constant 0.000000e+00 : f32
    %110 = vector.broadcast %cst_43 : f32 to vector<24x32xf32>
    %111 = arith.maximumf %109, %110 : vector<24x32xf32>
    %c0_44 = arith.constant 0 : index
    %c0_45 = arith.constant 0 : index
    %112 = vector.load %arg9[%c0_44, %c0_45] : memref<32x128xf32, #tpu.memory_space<vmem>>, vector<32x128xf32>
    %cst_46 = arith.constant dense<0.000000e+00> : vector<24x128xf32>
    %113 = tpu.matmul %111, %112, %cst_46 {dimension_numbers = #tpu.dot_dimension_numbers<[1], [0], [0], [1], [0, 0, 1, 1], [], []>} : vector<24x32xf32>, vector<32x128xf32>, vector<24x128xf32> -> vector<24x128xf32>
    %c0_47 = arith.constant 0 : index
    %c0_48 = arith.constant 0 : index
    %114 = vector.load %arg10[%c0_47, %c0_48] : memref<1x128xf32, #tpu.memory_space<vmem>>, vector<1x128xf32>
    %115 = vector.broadcast %114 : vector<1x128xf32> to vector<24x128xf32>
    %116 = arith.addf %113, %115 : vector<24x128xf32>
    %c0_49 = arith.constant 0 : index
    %c0_50 = arith.constant 0 : index
    %117 = vector.load %arg11[%c0_49, %c0_50] : memref<24x128xf32, #tpu.memory_space<vmem>>, vector<24x128xf32>
    tpu.vector_store %arg11[%c0_49, %c0_50], %116 {strides = array<i32>} : memref<24x128xf32, #tpu.memory_space<vmem>>, vector<24x128xf32>,
    return
  }
  func.func @transform_0(%arg0: i32) -> (i32, i32) {
    %c0_i32 = arith.constant 0 : i32
    %c0_i32_0 = arith.constant 0 : i32
    return %arg0, %c0_i32 : i32, i32
  }
  func.func @transform_1(%arg0: i32) -> (i32, i32) {
    %c0_i32 = arith.constant 0 : i32
    %c0_i32_0 = arith.constant 0 : i32
    %c0_i32_1 = arith.constant 0 : i32
    return %c0_i32, %c0_i32_0 : i32, i32
  }
  func.func @transform_2(%arg0: i32) -> (i32, i32) {
    %c0_i32 = arith.constant 0 : i32
    %c0_i32_0 = arith.constant 0 : i32
    %c0_i32_1 = arith.constant 0 : i32
    return %c0_i32, %c0_i32_0 : i32, i32
  }
  func.func @transform_3(%arg0: i32) -> (i32, i32) {
    %c0_i32 = arith.constant 0 : i32
    %c0_i32_0 = arith.constant 0 : i32
    %c0_i32_1 = arith.constant 0 : i32
    return %c0_i32, %c0_i32_0 : i32, i32
  }
  func.func @transform_4(%arg0: i32) -> (i32, i32) {
    %c0_i32 = arith.constant 0 : i32
    %c0_i32_0 = arith.constant 0 : i32
    %c0_i32_1 = arith.constant 0 : i32
    return %c0_i32, %c0_i32_0 : i32, i32
  }
  func.func @transform_5(%arg0: i32) -> (i32, i32) {
    %c0_i32 = arith.constant 0 : i32
    %c0_i32_0 = arith.constant 0 : i32
    %c0_i32_1 = arith.constant 0 : i32
    return %c0_i32, %c0_i32_0 : i32, i32
  }
  func.func @transform_6(%arg0: i32) -> (i32, i32, i32) {
    %c0_i32 = arith.constant 0 : i32
    %c0_i32_0 = arith.constant 0 : i32
    %c0_i32_1 = arith.constant 0 : i32
    %c0_i32_2 = arith.constant 0 : i32
    return %c0_i32, %c0_i32_0, %c0_i32_1 : i32, i32, i32
  }
  func.func @transform_7(%arg0: i32) -> (i32, i32) {
    %c0_i32 = arith.constant 0 : i32
    %c0_i32_0 = arith.constant 0 : i32
    %c0_i32_1 = arith.constant 0 : i32
    return %c0_i32, %c0_i32_0 : i32, i32
  }
  func.func @transform_8(%arg0: i32) -> (i32, i32) {
    %c0_i32 = arith.constant 0 : i32
    %c0_i32_0 = arith.constant 0 : i32
    %c0_i32_1 = arith.constant 0 : i32
    return %c0_i32, %c0_i32_0 : i32, i32
  }
  func.func @transform_9(%arg0: i32) -> (i32, i32) {
    %c0_i32 = arith.constant 0 : i32
    %c0_i32_0 = arith.constant 0 : i32
    %c0_i32_1 = arith.constant 0 : i32
    return %c0_i32, %c0_i32_0 : i32, i32
  }
  func.func @transform_10(%arg0: i32) -> (i32, i32) {
    %c0_i32 = arith.constant 0 : i32
    %c0_i32_0 = arith.constant 0 : i32
    return %arg0, %c0_i32 : i32, i32
  }
}

</mosaic_0001>

<llo_original>
// kernel: tpu_custom_call.1
$region0: #{tpu_custom_call.1}
  #allocation0 [shape = 'u32[]', space=smem, size = 0x4, offset = 0x4, fixed_abs, tag = 'smem constant byte address 0x4 - core index']
  #allocation1 [shape = 'u32[144,128]{1,0:T(1,128)}', space=vmem, size = 0x12000, scoped, tag = 'internal scratch']
  %s0 = inlined_call_operand.vmem [shape: f32[24,16], index: 0, kind: input, shape index: {}]
  %s1 = inlined_call_operand.hbm [shape: f32[24,24], index: 1, kind: input, shape index: {}]
  %s2 = inlined_call_operand.hbm [shape: f32[16,32], index: 2, kind: input, shape index: {}]
  %s3 = inlined_call_operand.vmem [shape: f32[32,384], index: 3, kind: input, shape index: {}]
  %s4 = inlined_call_operand.hbm [shape: f32[1,384], index: 4, kind: input, shape index: {}]
  %s5 = inlined_call_operand.vmem [shape: f32[128,32], index: 5, kind: input, shape index: {}]
  %s6 = inlined_call_operand.vmem [shape: f32[3,32,32], index: 6, kind: input, shape index: {}]
  %s7 = inlined_call_operand.hbm [shape: f32[9,32], index: 7, kind: input, shape index: {}]
  %s8 = inlined_call_operand.vmem [shape: f32[32,128], index: 8, kind: input, shape index: {}]
  %s9 = inlined_call_operand.vmem [shape: f32[1,128], index: 9, kind: input, shape index: {}]
  %s10 = inlined_call_operand.hbm [shape: f32[24,128], index: 10, kind: output, shape index: {}]
  %s11 = sld [smem:[#allocation0]]
  $region66: #{tpu_custom_call.1} parent=0
    _
  %s13 = ssub.s32 1, %s11
  %s14 = scalar_select 0, %s13, %s11
  $region1: #{tpu_custom_call.1} parent=0
    #allocation2 [shape = 'u8[12288]{0}', space=vmem, size = 0x3000, scoped, tag = 'input window, operand 1, single buffered']
    #allocation3 [shape = 's32[1]{0}', space=sflag, size = 0x4, scoped, tag = 'scoped memory for tpu_custom_call.1']
    #allocation4 [shape = 's32[1]{0}', space=sflag, size = 0x4, scoped, tag = 'scoped memory for tpu_custom_call.1']
    #allocation5 [shape = 'u8[8192]{0}', space=vmem, size = 0x2000, scoped, tag = 'input window, operand 2, single buffered']
    #allocation6 [shape = 's32[1]{0}', space=sflag, size = 0x4, scoped, tag = 'scoped memory for tpu_custom_call.1']
    #allocation7 [shape = 'u8[1536]{0}', space=vmem, size = 0x800, scoped, tag = 'input window, operand 4, single buffered']
    #allocation8 [shape = 'u8[8192]{0}', space=vmem, size = 0x2000, scoped, tag = 'input window, operand 7, single buffered']
    #allocation9 [shape = 's32[1]{0}', space=sflag, size = 0x4, scoped, tag = 'scoped memory for tpu_custom_call.1']
    #allocation10 [shape = 'u8[12288]{0}', space=vmem, size = 0x3000, scoped, tag = 'output window, operand 0, single buffered']
    %15 = vsyncpa [#allocation3], 0
    %16 = vsyncpa [#allocation6], 0
    %17 = vsyncpa [#allocation9], 0
    %18 = vsyncpa [#allocation4], 0
    // Predicated region
    $region2: #{tpu_custom_call.1} parent=1 // pred_check
      _
    $region3: #{tpu_custom_call.1} parent=1 // pred_check_branch
      %20 = sbr.rel (0) target = $region5
    $region4: #{tpu_custom_call.1} parent=1 // pred_region
      _
    $region5: #{tpu_custom_call.1} parent=1 // pred_fallthru
      _
    // Predicated region
    $region6: #{tpu_custom_call.1} parent=1 // pred_check
      _
    $region7: #{tpu_custom_call.1} parent=1 // pred_check_branch
      %22 = sbr.rel (0) target = $region9
    $region8: #{tpu_custom_call.1} parent=1 // pred_region
      %s24 = ssub.s32 384, 384
      %25 = vsyncadd [#allocation3], %s24
      %s26 = sshll.u32 [#allocation2], 4
      %s27 = int_to_ptr.vmem [resolvable:$true] %s26
      %32 = dma.hbm_to_vmem [thread:$0]  %s1, 384, %s27, [#allocation3], 128, 128, 8
    $region9: #{tpu_custom_call.1} parent=1 // pred_fallthru
      _
    // Predicated region
    $region10: #{tpu_custom_call.1} parent=1 // pred_check
      _
    $region11: #{tpu_custom_call.1} parent=1 // pred_check_branch
      %34 = sbr.rel (0) target = $region13
    $region12: #{tpu_custom_call.1} parent=1 // pred_region
      %s36 = ssub.s32 256, 256
      %37 = vsyncadd [#allocation6], %s36
      %s38 = sshll.u32 [#allocation5], 4
      %s39 = int_to_ptr.vmem [resolvable:$true] %s38
      %44 = dma.hbm_to_vmem [thread:$0]  %s2, 256, %s39, [#allocation6], 128, 128, 8
    $region13: #{tpu_custom_call.1} parent=1 // pred_fallthru
      _
    // Predicated region
    $region14: #{tpu_custom_call.1} parent=1 // pred_check
      _
    $region15: #{tpu_custom_call.1} parent=1 // pred_check_branch
      %46 = sbr.rel (0) target = $region17
    $region16: #{tpu_custom_call.1} parent=1 // pred_region
      _
    $region17: #{tpu_custom_call.1} parent=1 // pred_fallthru
      _
    // Predicated region
    $region18: #{tpu_custom_call.1} parent=1 // pred_check
      _
    $region19: #{tpu_custom_call.1} parent=1 // pred_check_branch
      %48 = sbr.rel (0) target = $region21
    $region20: #{tpu_custom_call.1} parent=1 // pred_region
      %s50 = ssub.s32 48, 48
      %51 = vsyncadd [#allocation6], %s50
      %s53 = sshll.u32 [#allocation7], 4
      %s54 = int_to_ptr.vmem [resolvable:$true] %s53
      %56 = dma.hbm_to_vmem [thread:$0]  %s4, 48, %s54, [#allocation6]
    $region21: #{tpu_custom_call.1} parent=1 // pred_fallthru
      _
    // Predicated region
    $region22: #{tpu_custom_call.1} parent=1 // pred_check
      _
    $region23: #{tpu_custom_call.1} parent=1 // pred_check_branch
      %58 = sbr.rel (0) target = $region25
    $region24: #{tpu_custom_call.1} parent=1 // pred_region
      _
    $region25: #{tpu_custom_call.1} parent=1 // pred_fallthru
      _
    // Predicated region
    $region26: #{tpu_custom_call.1} parent=1 // pred_check
      _
    $region27: #{tpu_custom_call.1} parent=1 // pred_check_branch
      %60 = sbr.rel (0) target = $region29
    $region28: #{tpu_custom_call.1} parent=1 // pred_region
      _
    $region29: #{tpu_custom_call.1} parent=1 // pred_fallthru
      _
    // Predicated region
    $region30: #{tpu_custom_call.1} parent=1 // pred_check
      _
    $region31: #{tpu_custom_call.1} parent=1 // pred_check_branch
      %62 = sbr.rel (0) target = $region33
    $region32: #{tpu_custom_call.1} parent=1 // pred_region
      %s64 = ssub.s32 256, 256
      %65 = vsyncadd [#allocation9], %s64
      %s66 = sshll.u32 [#allocation8], 4
      %s67 = int_to_ptr.vmem [resolvable:$true] %s66
      %72 = dma.hbm_to_vmem [thread:$0]  %s7, 256, %s67, [#allocation9], 128, 128, 8
    $region33: #{tpu_custom_call.1} parent=1 // pred_fallthru
      _
    // Predicated region
    $region34: #{tpu_custom_call.1} parent=1 // pred_check
      _
    $region35: #{tpu_custom_call.1} parent=1 // pred_check_branch
      %74 = sbr.rel (0) target = $region37
    $region36: #{tpu_custom_call.1} parent=1 // pred_region
      _
    $region37: #{tpu_custom_call.1} parent=1 // pred_fallthru
      _
    // Predicated region
    $region38: #{tpu_custom_call.1} parent=1 // pred_check
      _
    $region39: #{tpu_custom_call.1} parent=1 // pred_check_branch
      %76 = sbr.rel (0) target = $region41
    $region40: #{tpu_custom_call.1} parent=1 // pred_region
      _
    $region41: #{tpu_custom_call.1} parent=1 // pred_fallthru
      _
    // Predicated region
    $region42: #{tpu_custom_call.1} parent=1 // pred_check
      _
    $region43: #{tpu_custom_call.1} parent=1 // pred_check_branch
      %78 = sbr.rel (0) target = $region45
    $region44: #{tpu_custom_call.1} parent=1 // pred_region
      %79 = dma.done [#allocation3], 384
    $region45: #{tpu_custom_call.1} parent=1 // pred_fallthru
      _
    // Predicated region
    $region46: #{tpu_custom_call.1} parent=1 // pred_check
      _
    $region47: #{tpu_custom_call.1} parent=1 // pred_check_branch
      %81 = sbr.rel (0) target = $region49
    $region48: #{tpu_custom_call.1} parent=1 // pred_region
      %82 = dma.done [#allocation6], 256
    $region49: #{tpu_custom_call.1} parent=1 // pred_fallthru
      _
    // Predicated region
    $region50: #{tpu_custom_call.1} parent=1 // pred_check
      _
    $region51: #{tpu_custom_call.1} parent=1 // pred_check_branch
      %84 = sbr.rel (0) target = $region53
    $region52: #{tpu_custom_call.1} parent=1 // pred_region
      %85 = dma.done [#allocation6], 48
    $region53: #{tpu_custom_call.1} parent=1 // pred_fallthru
      _
    // Predicated region
    $region54: #{tpu_custom_call.1} parent=1 // pred_check
      _
    $region55: #{tpu_custom_call.1} parent=1 // pred_check_branch
      %87 = sbr.rel (0) target = $region57
    $region56: #{tpu_custom_call.1} parent=1 // pred_region
      %88 = dma.done [#allocation9], 256
    $region57: #{tpu_custom_call.1} parent=1 // pred_fallthru
      _
    %v89 = vld [vmem:[%s0] sm:$0xff]
    %v90 = vld [vmem:[%s0 + $0x8] sm:$0xff]
    %v91 = vld [vmem:[%s0 + $0x10] sm:$0xff]
    %v92 = vld [vmem:[#allocation8] sm:$0xff]
    %v93 = vld [vmem:[#allocation8 + $0x8] sm:$0x1]
    %v94 = vld [vmem:[#allocation5] sm:$0xff]
    %v95 = vld [vmem:[#allocation5 + $0x8] sm:$0xff]
    %v96 = vlaneseq
    %v97 = vshrl.u32 %v96, 7
    %v98 = vsub.s32 0, %v97
    %v99 = vrot.slane %v92, %v98
    %vm100 = vcmask 130048
    %v102 = vsel %vm100, %v89, 0
    %v105 = vsel %vm100, %v90, 0
    %v108 = vsel %vm100, %v91, 0
    %110 = vmatprep.subr.mxu0 0.0
    %111 = vmatpush1.msra.mxu0 %v94
    %112 = vmatprep.subr.mxu0 0.0
    %113 = vmatpush1.msra.mxu0 %v95
    %114 = vmatprep.subr.mxu0 0.0
    %115 = vmatpush1.msra.mxu0 0.0
    %116 = vmatprep.subr.mxu0 0.0
    %117 = vmatpush1.msra.mxu0 0.0
    %118 = vmatprep.subr.mxu0 0.0
    %119 = vmatpush1.msra.mxu0 0.0
    %120 = vmatprep.subr.mxu0 0.0
    %121 = vmatpush1.msra.mxu0 0.0
    %122 = vmatprep.subr.mxu0 0.0
    %123 = vmatpush1.msra.mxu0 0.0
    %124 = vmatprep.subr.mxu0 0.0
    %125 = vmatpush1.msra.mxu0 0.0
    %126 = vmatprep.subr.mxu0 0.0
    %127 = vmatpush1.msra.mxu0 0.0
    %128 = vmatprep.subr.mxu0 0.0
    %129 = vmatpush1.msra.mxu0 0.0
    %130 = vmatprep.subr.mxu0 0.0
    %131 = vmatpush1.msra.mxu0 0.0
    %132 = vmatprep.subr.mxu0 0.0
    %133 = vmatpush1.msra.mxu0 0.0
    %134 = vmatprep.subr.mxu0 0.0
    %135 = vmatpush1.msra.mxu0 0.0
    %136 = vmatprep.subr.mxu0 0.0
    %137 = vmatpush1.msra.mxu0 0.0
    %138 = vmatprep.subr.mxu0 0.0
    %139 = vmatpush1.msra.mxu0 0.0
    %140 = vmatprep.subr.mxu0 0.0
    %141 = vmatpush1.msra.mxu0 0.0
    %142 = vmatprep.subr.mxu0 0.0
    %143 = vmatpush1.msra.mxu0 0.0
    %144 = vmatprep.subr.mxu0 0.0
    %145 = vmatpush1.msra.mxu0 0.0
    %146 = vmatprep.subr.mxu0 0.0
    %147 = vmatpush1.msra.mxu0 0.0
    %148 = vmatprep.subr.mxu0 0.0
    %149 = vmatpush1.msra.mxu0 0.0
    %150 = vmatprep.subr.mxu0 0.0
    %151 = vmatpush1.msra.mxu0 0.0
    %152 = vmatprep.subr.mxu0 0.0
    %153 = vmatpush1.msra.mxu0 0.0
    %154 = vmatprep.subr.mxu0 0.0
    %155 = vmatpush1.msra.mxu0 0.0
    %156 = vmatprep.subr.mxu0 0.0
    %157 = vmatpush1.msra.mxu0 0.0
    %158 = vmatprep.subr.mxu0 0.0
    %159 = vmatpush1.msra.mxu0 0.0
    %160 = vmatprep.subr.mxu0 0.0
    %161 = vmatpush1.msra.mxu0 0.0
    %162 = vmatprep.subr.mxu0 0.0
    %163 = vmatpush1.msra.mxu0 0.0
    %164 = vmatprep.subr.mxu0 0.0
    %165 = vmatpush1.msra.mxu0 0.0
    %166 = vmatprep.subr.mxu0 0.0
    %167 = vmatpush1.msra.mxu0 0.0
    %168 = vmatprep.subr.mxu0 0.0
    %169 = vmatpush1.msra.mxu0 0.0
    %170 = vmatprep.subr.mxu0 0.0
    %171 = vmatpush1.msra.mxu0 0.0
    %172 = vmatprep.subr.mxu0 0.0
    %173 = vmatpush1.msra.mxu0 0.0
    %174 = vmatprep.mubr.f32.mxu0 0.0
    %175 = vmatmul.mubr.f32.gmra.mrb[0].mxu0 %v102
    %v176 = vpop.f32.mrb[0].mxu0
    %v177 = vadd.f32 %v99, %v176
    %v178 = vpop.f32.mrb[0].mxu0
    %179 = vmatprep.mubr.f32.mxu0 0.0
    %180 = vmatmul.mubr.f32.gmra.mrb[0].mxu0 %v105
    %v181 = vpop.f32.mrb[0].mxu0
    %v182 = vadd.f32 %v99, %v181
    %v183 = vpop.f32.mrb[0].mxu0
    %184 = vmatprep.mubr.f32.mxu0 0.0
    %185 = vmatmul.mubr.f32.gmra.mrb[0].mxu0 %v108
    %v186 = vpop.f32.mrb[0].mxu0
    %v187 = vadd.f32 %v99, %v186
    %v188 = vpop.f32.mrb[0].mxu0
    %189 = vdwg.mxu0
    %v190 = vmax.f32 %v177, 0.0
    %v191 = vmax.f32 %v182, 0.0
    %v192 = vmax.f32 %v187, 0.0
    %v193 = vld [vmem:[%s3] sm:$0xff]
    %v194 = vld [vmem:[%s3 + $0x8] sm:$0xff]
    %v195 = vld [vmem:[%s3 + $0x10] sm:$0xff]
    %v196 = vld [vmem:[%s3 + $0x18] sm:$0xff]
    %v197 = vld [vmem:[%s3 + $0x20] sm:$0xff]
    %v198 = vld [vmem:[%s3 + $0x28] sm:$0xff]
    %v199 = vld [vmem:[%s3 + $0x30] sm:$0xff]
    %v200 = vld [vmem:[%s3 + $0x38] sm:$0xff]
    %v201 = vld [vmem:[%s3 + $0x40] sm:$0xff]
    %v202 = vld [vmem:[%s3 + $0x48] sm:$0xff]
    %v203 = vld [vmem:[%s3 + $0x50] sm:$0xff]
    %v204 = vld [vmem:[%s3 + $0x58] sm:$0xff]
    %v205 = vld [vmem:[#allocation7] sm:$0x7]
    %v207 = vlaneseq
    %v208 = vshrl.u32 %v207, 7
    %v209 = vsub.s32 0, %v208
    %v210 = vrot.slane %v205, %v209
    %v211 = vlaneseq
    %v212 = vshrl.u32 %v211, 7
    %v213 = vsub.s32 1, %v212
    %v214 = vrot.slane %v205, %v213
    %v215 = vlaneseq
    %v216 = vshrl.u32 %v215, 7
    %v217 = vsub.s32 2, %v216
    %v218 = vrot.slane %v205, %v217
    %vm222 = vcmask 261120
    %v224 = vsel %vm222, %v190, 0
    %v227 = vsel %vm222, %v191, 0
    %v230 = vsel %vm222, %v192, 0
    %232 = vmatprep.subr.mxu0 %v194
    %233 = vmatpush1.msra.mxu0 %v193
    %234 = vmatprep.subr.mxu0 %v197
    %235 = vmatpush1.msra.mxu0 %v196
    %236 = vmatprep.subr.mxu0 %v200
    %237 = vmatpush1.msra.mxu0 %v199
    %238 = vmatprep.subr.mxu0 %v203
    %239 = vmatpush1.msra.mxu0 %v202
    %240 = vmatprep.subr.mxu0 0.0
    %241 = vmatpush1.msra.mxu0 0.0
    %242 = vmatprep.subr.mxu0 0.0
    %243 = vmatpush1.msra.mxu0 0.0
    %244 = vmatprep.subr.mxu0 0.0
    %245 = vmatpush1.msra.mxu0 0.0
    %246 = vmatprep.subr.mxu0 0.0
    %247 = vmatpush1.msra.mxu0 0.0
    %248 = vmatprep.subr.mxu0 0.0
    %249 = vmatpush1.msra.mxu0 0.0
    %250 = vmatprep.subr.mxu0 0.0
    %251 = vmatpush1.msra.mxu0 0.0
    %252 = vmatprep.subr.mxu0 0.0
    %253 = vmatpush1.msra.mxu0 0.0
    %254 = vmatprep.subr.mxu0 0.0
    %255 = vmatpush1.msra.mxu0 0.0
    %256 = vmatprep.subr.mxu0 0.0
    %257 = vmatpush1.msra.mxu0 0.0
    %258 = vmatprep.subr.mxu0 0.0
    %259 = vmatpush1.msra.mxu0 0.0
    %260 = vmatprep.subr.mxu0 0.0
    %261 = vmatpush1.msra.mxu0 0.0
    %262 = vmatprep.subr.mxu0 0.0
    %263 = vmatpush1.msra.mxu0 0.0
    %264 = vmatprep.subr.mxu0 0.0
    %265 = vmatpush1.msra.mxu0 0.0
    %266 = vmatprep.subr.mxu0 0.0
    %267 = vmatpush1.msra.mxu0 0.0
    %268 = vmatprep.subr.mxu0 0.0
    %269 = vmatpush1.msra.mxu0 0.0
    %270 = vmatprep.subr.mxu0 0.0
    %271 = vmatpush1.msra.mxu0 0.0
    %272 = vmatprep.subr.mxu0 0.0
    %273 = vmatpush1.msra.mxu0 0.0
    %274 = vmatprep.subr.mxu0 0.0
    %275 = vmatpush1.msra.mxu0 0.0
    %276 = vmatprep.subr.mxu0 0.0
    %277 = vmatpush1.msra.mxu0 0.0
    %278 = vmatprep.subr.mxu0 0.0
    %279 = vmatpush1.msra.mxu0 0.0
    %280 = vmatprep.subr.mxu0 0.0
    %281 = vmatpush1.msra.mxu0 0.0
    %282 = vmatprep.subr.mxu0 0.0
    %283 = vmatpush1.msra.mxu0 0.0
    %284 = vmatprep.subr.mxu0 0.0
    %285 = vmatpush1.msra.mxu0 0.0
    %286 = vmatprep.subr.mxu0 0.0
    %287 = vmatpush1.msra.mxu0 0.0
    %288 = vmatprep.subr.mxu0 0.0
    %289 = vmatpush1.msra.mxu0 0.0
    %290 = vmatprep.subr.mxu0 0.0
    %291 = vmatpush1.msra.mxu0 0.0
    %292 = vmatprep.subr.mxu0 0.0
    %293 = vmatpush1.msra.mxu0 0.0
    %294 = vmatprep.subr.mxu0 0.0
    %295 = vmatpush1.msra.mxu0 0.0
    %296 = vmatprep.mubr.f32.mxu0 0.0
    %297 = vmatmul.mubr.f32.gmra.mrb[0].mxu0 %v224
    %v298 = vpop.f32.mrb[0].mxu0
    %v299 = vadd.f32 %v210, %v298
    %v300 = vpop.f32.mrb[0].mxu0
    %v301 = vadd.f32 %v214, %v300
    %302 = vmatprep.mubr.f32.mxu0 0.0
    %303 = vmatmul.mubr.f32.gmra.mrb[0].mxu0 %v227
    %v304 = vpop.f32.mrb[0].mxu0
    %v305 = vadd.f32 %v210, %v304
    %v306 = vpop.f32.mrb[0].mxu0
    %v307 = vadd.f32 %v214, %v306
    %308 = vmatprep.mubr.f32.mxu0 0.0
    %309 = vmatmul.mubr.f32.gmra.mrb[0].mxu0 %v230
    %v310 = vpop.f32.mrb[0].mxu0
    %v311 = vadd.f32 %v210, %v310
    %v312 = vpop.f32.mrb[0].mxu0
    %v313 = vadd.f32 %v214, %v312
    %314 = vdwg.mxu0
    %315 = vmatprep.subr.mxu0 0.0
    %316 = vmatpush1.msra.mxu0 %v195
    %317 = vmatprep.subr.mxu0 0.0
    %318 = vmatpush1.msra.mxu0 %v198
    %319 = vmatprep.subr.mxu0 0.0
    %320 = vmatpush1.msra.mxu0 %v201
    %321 = vmatprep.subr.mxu0 0.0
    %322 = vmatpush1.msra.mxu0 %v204
    %323 = vmatprep.subr.mxu0 0.0
    %324 = vmatpush1.msra.mxu0 0.0
    %325 = vmatprep.subr.mxu0 0.0
    %326 = vmatpush1.msra.mxu0 0.0
    %327 = vmatprep.subr.mxu0 0.0
    %328 = vmatpush1.msra.mxu0 0.0
    %329 = vmatprep.subr.mxu0 0.0
    %330 = vmatpush1.msra.mxu0 0.0
    %331 = vmatprep.subr.mxu0 0.0
    %332 = vmatpush1.msra.mxu0 0.0
    %333 = vmatprep.subr.mxu0 0.0
    %334 = vmatpush1.msra.mxu0 0.0
    %335 = vmatprep.subr.mxu0 0.0
    %336 = vmatpush1.msra.mxu0 0.0
    %337 = vmatprep.subr.mxu0 0.0
    %338 = vmatpush1.msra.mxu0 0.0
    %339 = vmatprep.subr.mxu0 0.0
    %340 = vmatpush1.msra.mxu0 0.0
    %341 = vmatprep.subr.mxu0 0.0
    %342 = vmatpush1.msra.mxu0 0.0
    %343 = vmatprep.subr.mxu0 0.0
    %344 = vmatpush1.msra.mxu0 0.0
    %345 = vmatprep.subr.mxu0 0.0
    %346 = vmatpush1.msra.mxu0 0.0
    %347 = vmatprep.subr.mxu0 0.0
    %348 = vmatpush1.msra.mxu0 0.0
    %349 = vmatprep.subr.mxu0 0.0
    %350 = vmatpush1.msra.mxu0 0.0
    %351 = vmatprep.subr.mxu0 0.0
    %352 = vmatpush1.msra.mxu0 0.0
    %353 = vmatprep.subr.mxu0 0.0
    %354 = vmatpush1.msra.mxu0 0.0
    %355 = vmatprep.subr.mxu0 0.0
    %356 = vmatpush1.msra.mxu0 0.0
    %357 = vmatprep.subr.mxu0 0.0
    %358 = vmatpush1.msra.mxu0 0.0
    %359 = vmatprep.subr.mxu0 0.0
    %360 = vmatpush1.msra.mxu0 0.0
    %361 = vmatprep.subr.mxu0 0.0
    %362 = vmatpush1.msra.mxu0 0.0
    %363 = vmatprep.subr.mxu0 0.0
    %364 = vmatpush1.msra.mxu0 0.0
    %365 = vmatprep.subr.mxu0 0.0
    %366 = vmatpush1.msra.mxu0 0.0
    %367 = vmatprep.subr.mxu0 0.0
    %368 = vmatpush1.msra.mxu0 0.0
    %369 = vmatprep.subr.mxu0 0.0
    %370 = vmatpush1.msra.mxu0 0.0
    %371 = vmatprep.subr.mxu0 0.0
    %372 = vmatpush1.msra.mxu0 0.0
    %373 = vmatprep.subr.mxu0 0.0
    %374 = vmatpush1.msra.mxu0 0.0
    %375 = vmatprep.subr.mxu0 0.0
    %376 = vmatpush1.msra.mxu0 0.0
    %377 = vmatprep.subr.mxu0 0.0
    %378 = vmatpush1.msra.mxu0 0.0
    %379 = vmatprep.mubr.f32.mxu0 0.0
    %380 = vmatmul.mubr.f32.gmra.mrb[0].mxu0 %v224
    %v381 = vpop.f32.mrb[0].mxu0
    %v382 = vadd.f32 %v218, %v381
    %v383 = vpop.f32.mrb[0].mxu0
    %384 = vmatprep.mubr.f32.mxu0 0.0
    %385 = vmatmul.mubr.f32.gmra.mrb[0].mxu0 %v227
    %v386 = vpop.f32.mrb[0].mxu0
    %v387 = vadd.f32 %v218, %v386
    %v388 = vpop.f32.mrb[0].mxu0
    %389 = vmatprep.mubr.f32.mxu0 0.0
    %390 = vmatmul.mubr.f32.gmra.mrb[0].mxu0 %v230
    %v391 = vpop.f32.mrb[0].mxu0
    %v392 = vadd.f32 %v218, %v391
    %v393 = vpop.f32.mrb[0].mxu0
    %394 = vdwg.mxu0
    %395 = vmatprep.subr.mxu0 0.0
    %396 = vmatpush1.xpose.msra.mxu0 %v301
    %397 = vmatprep.subr.mxu0 0.0
    %398 = vmatpush1.xpose.msra.mxu0 %v307
    %399 = vmatprep.subr.mxu0 0.0
    %400 = vmatpush1.xpose.msra.mxu0 %v313
    %401 = vmatprep.subr.mxu0 0.0
    %402 = vmatpush1.xpose.msra.mxu0 0.0
    %403 = vmatprep.subr.mxu0 0.0
    %404 = vmatpush1.xpose.msra.mxu0 0.0
    %405 = vmatprep.subr.mxu0 0.0
    %406 = vmatpush1.xpose.msra.mxu0 0.0
    %407 = vmatprep.subr.mxu0 0.0
    %408 = vmatpush1.xpose.msra.mxu0 0.0
    %409 = vmatprep.subr.mxu0 0.0
    %410 = vmatpush1.xpose.msra.mxu0 0.0
    %411 = vmatprep.subr.mxu0 0.0
    %412 = vmatpush1.xpose.msra.mxu0 0.0
    %413 = vmatprep.subr.mxu0 0.0
    %414 = vmatpush1.xpose.msra.mxu0 0.0
    %415 = vmatprep.subr.mxu0 0.0
    %416 = vmatpush1.xpose.msra.mxu0 0.0
    %417 = vmatprep.subr.mxu0 0.0
    %418 = vmatpush1.xpose.msra.mxu0 0.0
    %419 = vmatprep.subr.mxu0 0.0
    %420 = vmatpush1.xpose.msra.mxu0 0.0
    %421 = vmatprep.subr.mxu0 0.0
    %422 = vmatpush1.xpose.msra.mxu0 0.0
    %423 = vmatprep.subr.mxu0 0.0
    %424 = vmatpush1.xpose.msra.mxu0 0.0
    %425 = vmatprep.subr.mxu0 0.0
    %426 = vmatpush1.xpose.msra.mxu0 0.0
    %427 = vmatprep.subr.mxu0 0.0
    %428 = vmatpush1.xpose.msra.mxu0 0.0
    %429 = vmatprep.subr.mxu0 0.0
    %430 = vmatpush1.xpose.msra.mxu0 0.0
    %431 = vmatprep.subr.mxu0 0.0
    %432 = vmatpush1.xpose.msra.mxu0 0.0
    %433 = vmatprep.subr.mxu0 0.0
    %434 = vmatpush1.xpose.msra.mxu0 0.0
    %435 = vmatprep.subr.mxu0 0.0
    %436 = vmatpush1.xpose.msra.mxu0 0.0
    %437 = vmatprep.subr.mxu0 0.0
    %438 = vmatpush1.xpose.msra.mxu0 0.0
    %439 = vmatprep.subr.mxu0 0.0
    %440 = vmatpush1.xpose.msra.mxu0 0.0
    %441 = vmatprep.subr.mxu0 0.0
    %442 = vmatpush1.xpose.msra.mxu0 0.0
    %443 = vmatprep.subr.mxu0 0.0
    %444 = vmatpush1.xpose.msra.mxu0 0.0
    %445 = vmatprep.subr.mxu0 0.0
    %446 = vmatpush1.xpose.msra.mxu0 0.0
    %447 = vmatprep.subr.mxu0 0.0
    %448 = vmatpush1.xpose.msra.mxu0 0.0
    %449 = vmatprep.subr.mxu0 0.0
    %450 = vmatpush1.xpose.msra.mxu0 0.0
    %451 = vmatprep.subr.mxu0 0.0
    %452 = vmatpush1.xpose.msra.mxu0 0.0
    %453 = vmatprep.subr.mxu0 0.0
    %454 = vmatpush1.xpose.msra.mxu0 0.0
    %455 = vmatprep.subr.mxu0 0.0
    %456 = vmatpush1.xpose.msra.mxu0 0.0
    %457 = vmatprep.subr.mxu0 0.0
    %458 = vmatpush1.xpose.msra.mxu0 0.0
    %459 = vmatprep.mubr.f32.mxu0 0.0
    %460 = vmatmul.mubr.f32.gmra.mrb[0].mxu0 %v299
    %v461 = vpop.f32.mrb[0].mxu0
    %v462 = vadd.f32 0.0, %v461
    %v463 = vpop.f32.mrb[0].mxu0
    %464 = vmatprep.mubr.f32.mxu0 0.0
    %465 = vmatmul.mubr.f32.gmra.mrb[0].mxu0 %v305
    %v466 = vpop.f32.mrb[0].mxu0
    %v467 = vadd.f32 0.0, %v466
    %v468 = vpop.f32.mrb[0].mxu0
    %469 = vmatprep.mubr.f32.mxu0 0.0
    %470 = vmatmul.mubr.f32.gmra.mrb[0].mxu0 %v311
    %v471 = vpop.f32.mrb[0].mxu0
    %v472 = vadd.f32 0.0, %v471
    %v473 = vpop.f32.mrb[0].mxu0
    %474 = vdwg.mxu0
    %v475 = vmul.f32 %v462, 0.17677669
    %v476 = vmul.f32 %v467, 0.17677669
    %v477 = vmul.f32 %v472, 0.17677669
    %v478 = vld [vmem:[#allocation2] sm:$0xff]
    %v479 = vld [vmem:[#allocation2 + $0x8] sm:$0xff]
    %v480 = vld [vmem:[#allocation2 + $0x10] sm:$0xff]
    %v481 = vadd.f32 %v475, %v478
    %v482 = vadd.f32 %v476, %v479
    %v483 = vadd.f32 %v477, %v480
    %vm484 = vcmask 195584
    %v485 = vsel %vm484, %v481, -inf
    %486 = vmax.xlane.f32.xlu0 %v485
    %v487 = vpop.xlane.xlu0 %486
    %v488 = vsel %vm484, %v482, -inf
    %489 = vmax.xlane.f32.xlu0 %v488
    %v490 = vpop.xlane.xlu0 %489
    %v491 = vsel %vm484, %v483, -inf
    %492 = vmax.xlane.f32.xlu0 %v491
    %v493 = vpop.xlane.xlu0 %492
    %v494 = vsub.f32 %v481, %v487
    %v495 = vsub.f32 %v482, %v490
    %v496 = vsub.f32 %v483, %v493
    %v497 = vmul.f32 %v494, 1.442695
    %v498 = vpow.pop %v497
    %v499 = vmul.f32 %v495, 1.442695
    %v500 = vpow.pop %v499
    %v501 = vmul.f32 %v496, 1.442695
    %v502 = vpow.pop %v501
    %v503 = vsel %vm484, %v498, 0.0
    %504 = vadd.xlane.f32.xlu0 %v503
    %v505 = vpop.xlane.xlu0 %504
    %v506 = vsel %vm484, %v500, 0.0
    %507 = vadd.xlane.f32.xlu0 %v506
    %v508 = vpop.xlane.xlu0 %507
    %v509 = vsel %vm484, %v502, 0.0
    %510 = vadd.xlane.f32.xlu0 %v509
    %v511 = vpop.xlane.xlu0 %510
    %v512 = vrcp.pop %v505
    %v513 = vrcp.pop %v508
    %v514 = vrcp.pop %v511
    %v515 = vmul.f32 %v498, %v512
    %v516 = vmul.f32 %v500, %v513
    %v517 = vmul.f32 %v502, %v514
    %v519 = vsel %vm484, %v515, 0
    %v522 = vsel %vm484, %v516, 0
    %v525 = vsel %vm484, %v517, 0
    %527 = vmatprep.subr.mxu0 0.0
    %528 = vmatpush1.msra.mxu0 %v382
    %529 = vmatprep.subr.mxu0 0.0
    %530 = vmatpush1.msra.mxu0 %v387
    %531 = vmatprep.subr.mxu0 0.0
    %532 = vmatpush1.msra.mxu0 %v392
    %533 = vmatprep.subr.mxu0 0.0
    %534 = vmatpush1.msra.mxu0 0.0
    %535 = vmatprep.subr.mxu0 0.0
    %536 = vmatpush1.msra.mxu0 0.0
    %537 = vmatprep.subr.mxu0 0.0
    %538 = vmatpush1.msra.mxu0 0.0
    %539 = vmatprep.subr.mxu0 0.0
    %540 = vmatpush1.msra.mxu0 0.0
    %541 = vmatprep.subr.mxu0 0.0
    %542 = vmatpush1.msra.mxu0 0.0
    %543 = vmatprep.subr.mxu0 0.0
    %544 = vmatpush1.msra.mxu0 0.0
    %545 = vmatprep.subr.mxu0 0.0
    %546 = vmatpush1.msra.mxu0 0.0
    %547 = vmatprep.subr.mxu0 0.0
    %548 = vmatpush1.msra.mxu0 0.0
    %549 = vmatprep.subr.mxu0 0.0
    %550 = vmatpush1.msra.mxu0 0.0
    %551 = vmatprep.subr.mxu0 0.0
    %552 = vmatpush1.msra.mxu0 0.0
    %553 = vmatprep.subr.mxu0 0.0
    %554 = vmatpush1.msra.mxu0 0.0
    %555 = vmatprep.subr.mxu0 0.0
    %556 = vmatpush1.msra.mxu0 0.0
    %557 = vmatprep.subr.mxu0 0.0
    %558 = vmatpush1.msra.mxu0 0.0
    %559 = vmatprep.subr.mxu0 0.0
    %560 = vmatpush1.msra.mxu0 0.0
    %561 = vmatprep.subr.mxu0 0.0
    %562 = vmatpush1.msra.mxu0 0.0
    %563 = vmatprep.subr.mxu0 0.0
    %564 = vmatpush1.msra.mxu0 0.0
    %565 = vmatprep.subr.mxu0 0.0
    %566 = vmatpush1.msra.mxu0 0.0
    %567 = vmatprep.subr.mxu0 0.0
    %568 = vmatpush1.msra.mxu0 0.0
    %569 = vmatprep.subr.mxu0 0.0
    %570 = vmatpush1.msra.mxu0 0.0
    %571 = vmatprep.subr.mxu0 0.0
    %572 = vmatpush1.msra.mxu0 0.0
    %573 = vmatprep.subr.mxu0 0.0
    %574 = vmatpush1.msra.mxu0 0.0
    %575 = vmatprep.subr.mxu0 0.0
    %576 = vmatpush1.msra.mxu0 0.0
    %577 = vmatprep.subr.mxu0 0.0
    %578 = vmatpush1.msra.mxu0 0.0
    %579 = vmatprep.subr.mxu0 0.0
    %580 = vmatpush1.msra.mxu0 0.0
    %581 = vmatprep.subr.mxu0 0.0
    %582 = vmatpush1.msra.mxu0 0.0
    %583 = vmatprep.subr.mxu0 0.0
    %584 = vmatpush1.msra.mxu0 0.0
    %585 = vmatprep.subr.mxu0 0.0
    %586 = vmatpush1.msra.mxu0 0.0
    %587 = vmatprep.subr.mxu0 0.0
    %588 = vmatpush1.msra.mxu0 0.0
    %589 = vmatprep.subr.mxu0 0.0
    %590 = vmatpush1.msra.mxu0 0.0
    %591 = vmatprep.mubr.f32.mxu0 0.0
    %592 = vmatmul.mubr.f32.gmra.mrb[0].mxu0 %v519
    %v593 = vpop.f32.mrb[0].mxu0
    %v594 = vadd.f32 0.0, %v593
    %v595 = vpop.f32.mrb[0].mxu0
    %596 = vmatprep.mubr.f32.mxu0 0.0
    %597 = vmatmul.mubr.f32.gmra.mrb[0].mxu0 %v522
    %v598 = vpop.f32.mrb[0].mxu0
    %v599 = vadd.f32 0.0, %v598
    %v600 = vpop.f32.mrb[0].mxu0
    %601 = vmatprep.mubr.f32.mxu0 0.0
    %602 = vmatmul.mubr.f32.gmra.mrb[0].mxu0 %v525
    %v603 = vpop.f32.mrb[0].mxu0
    %v604 = vadd.f32 0.0, %v603
    %v605 = vpop.f32.mrb[0].mxu0
    %606 = vdwg.mxu0
    %v607 = vld [vmem:[%s5] sm:$0xff]
    %v608 = vld [vmem:[%s5 + $0x8] sm:$0xff]
    %v609 = vld [vmem:[%s5 + $0x10] sm:$0xff]
    %v610 = vld [vmem:[%s5 + $0x18] sm:$0xff]
    %v611 = vld [vmem:[%s5 + $0x20] sm:$0xff]
    %v612 = vld [vmem:[%s5 + $0x28] sm:$0xff]
    %v613 = vld [vmem:[%s5 + $0x30] sm:$0xff]
    %v614 = vld [vmem:[%s5 + $0x38] sm:$0xff]
    %v615 = vld [vmem:[%s5 + $0x40] sm:$0xff]
    %v616 = vld [vmem:[%s5 + $0x48] sm:$0xff]
    %v617 = vld [vmem:[%s5 + $0x50] sm:$0xff]
    %v618 = vld [vmem:[%s5 + $0x58] sm:$0xff]
    %v619 = vld [vmem:[%s5 + $0x60] sm:$0xff]
    %v620 = vld [vmem:[%s5 + $0x68] sm:$0xff]
    %v621 = vld [vmem:[%s5 + $0x70] sm:$0xff]
    %v622 = vld [vmem:[%s5 + $0x78] sm:$0xff]
    %v623 = vlaneseq
    %v624 = vshrl.u32 %v623, 7
    %v625 = vsub.s32 1, %v624
    %v626 = vrot.slane %v92, %v625
    %627 = vmatprep.subr.mxu0 0.0
    %628 = vmatpush1.msra.mxu0 %v607
    %629 = vmatprep.subr.mxu0 0.0
    %630 = vmatpush1.msra.mxu0 %v608
    %631 = vmatprep.subr.mxu0 0.0
    %632 = vmatpush1.msra.mxu0 %v609
    %633 = vmatprep.subr.mxu0 0.0
    %634 = vmatpush1.msra.mxu0 %v610
    %635 = vmatprep.subr.mxu0 0.0
    %636 = vmatpush1.msra.mxu0 %v611
    %637 = vmatprep.subr.mxu0 0.0
    %638 = vmatpush1.msra.mxu0 %v612
    %639 = vmatprep.subr.mxu0 0.0
    %640 = vmatpush1.msra.mxu0 %v613
    %641 = vmatprep.subr.mxu0 0.0
    %642 = vmatpush1.msra.mxu0 %v614
    %643 = vmatprep.subr.mxu0 0.0
    %644 = vmatpush1.msra.mxu0 %v615
    %645 = vmatprep.subr.mxu0 0.0
    %646 = vmatpush1.msra.mxu0 %v616
    %647 = vmatprep.subr.mxu0 0.0
    %648 = vmatpush1.msra.mxu0 %v617
    %649 = vmatprep.subr.mxu0 0.0
    %650 = vmatpush1.msra.mxu0 %v618
    %651 = vmatprep.subr.mxu0 0.0
    %652 = vmatpush1.msra.mxu0 %v619
    %653 = vmatprep.subr.mxu0 0.0
    %654 = vmatpush1.msra.mxu0 %v620
    %655 = vmatprep.subr.mxu0 0.0
    %656 = vmatpush1.msra.mxu0 %v621
    %657 = vmatprep.subr.mxu0 0.0
    %658 = vmatpush1.msra.mxu0 %v622
    %659 = vmatprep.subr.mxu0 0.0
    %660 = vmatpush1.msra.mxu0 0.0
    %661 = vmatprep.subr.mxu0 0.0
    %662 = vmatpush1.msra.mxu0 0.0
    %663 = vmatprep.subr.mxu0 0.0
    %664 = vmatpush1.msra.mxu0 0.0
    %665 = vmatprep.subr.mxu0 0.0
    %666 = vmatpush1.msra.mxu0 0.0
    %667 = vmatprep.subr.mxu0 0.0
    %668 = vmatpush1.msra.mxu0 0.0
    %669 = vmatprep.subr.mxu0 0.0
    %670 = vmatpush1.msra.mxu0 0.0
    %671 = vmatprep.subr.mxu0 0.0
    %672 = vmatpush1.msra.mxu0 0.0
    %673 = vmatprep.subr.mxu0 0.0
    %674 = vmatpush1.msra.mxu0 0.0
    %675 = vmatprep.subr.mxu0 0.0
    %676 = vmatpush1.msra.mxu0 0.0
    %677 = vmatprep.subr.mxu0 0.0
    %678 = vmatpush1.msra.mxu0 0.0
    %679 = vmatprep.subr.mxu0 0.0
    %680 = vmatpush1.msra.mxu0 0.0
    %681 = vmatprep.subr.mxu0 0.0
    %682 = vmatpush1.msra.mxu0 0.0
    %683 = vmatprep.subr.mxu0 0.0
    %684 = vmatpush1.msra.mxu0 0.0
    %685 = vmatprep.subr.mxu0 0.0
    %686 = vmatpush1.msra.mxu0 0.0
    %687 = vmatprep.subr.mxu0 0.0
    %688 = vmatpush1.msra.mxu0 0.0
    %689 = vmatprep.subr.mxu0 0.0
    %690 = vmatpush1.msra.mxu0 0.0
    %691 = vmatprep.mubr.f32.mxu0 0.0
    %692 = vmatmul.mubr.f32.gmra.mrb[0].mxu0 %v594
    %v693 = vpop.f32.mrb[0].mxu0
    %v694 = vadd.f32 %v626, %v693
    %v695 = vpop.f32.mrb[0].mxu0
    %696 = vmatprep.mubr.f32.mxu0 0.0
    %697 = vmatmul.mubr.f32.gmra.mrb[0].mxu0 %v599
    %v698 = vpop.f32.mrb[0].mxu0
    %v699 = vadd.f32 %v626, %v698
    %v700 = vpop.f32.mrb[0].mxu0
    %701 = vmatprep.mubr.f32.mxu0 0.0
    %702 = vmatmul.mubr.f32.gmra.mrb[0].mxu0 %v604
    %v703 = vpop.f32.mrb[0].mxu0
    %v704 = vadd.f32 %v626, %v703
    %v705 = vpop.f32.mrb[0].mxu0
    %706 = vdwg.mxu0
    %v707 = vadd.f32 %v694, %v190
    %v708 = vadd.f32 %v699, %v191
    %v709 = vadd.f32 %v704, %v192
    %v710 = vsel %vm222, %v707, 0.0
    %711 = vadd.xlane.f32.xlu0 %v710
    %v712 = vpop.xlane.xlu0 %711
    %v713 = vsel %vm222, %v708, 0.0
    %714 = vadd.xlane.f32.xlu0 %v713
    %v715 = vpop.xlane.xlu0 %714
    %v716 = vsel %vm222, %v709, 0.0
    %717 = vadd.xlane.f32.xlu0 %v716
    %v718 = vpop.xlane.xlu0 %717
    %v719 = vrcp.pop 32.0
    %v720 = vmul.f32 %v712, %v719
    %v721 = vmul.f32 %v715, %v719
    %v722 = vmul.f32 %v718, %v719
    %v723 = vsub.f32 %v707, %v720
    %v724 = vsub.f32 %v708, %v721
    %v725 = vsub.f32 %v709, %v722
    %v726 = vmul.f32 %v723, %v723
    %v727 = vmul.f32 %v724, %v724
    %v728 = vmul.f32 %v725, %v725
    %v729 = vsel %vm222, %v726, 0.0
    %730 = vadd.xlane.f32.xlu0 %v729
    %v731 = vpop.xlane.xlu0 %730
    %v732 = vsel %vm222, %v727, 0.0
    %733 = vadd.xlane.f32.xlu0 %v732
    %v734 = vpop.xlane.xlu0 %733
    %v735 = vsel %vm222, %v728, 0.0
    %736 = vadd.xlane.f32.xlu0 %v735
    %v737 = vpop.xlane.xlu0 %736
    %v738 = vmul.f32 %v731, %v719
    %v739 = vmul.f32 %v734, %v719
    %v740 = vmul.f32 %v737, %v719
    %v741 = vadd.f32 %v738, 1e-05
    %v742 = vadd.f32 %v739, 1e-05
    %v743 = vadd.f32 %v740, 1e-05
    %v744 = vrsqrt.pop %v741
    %v745 = vrsqrt.pop %v742
    %v746 = vrsqrt.pop %v743
    %v747 = vmul.f32 %v723, %v744
    %v748 = vmul.f32 %v724, %v745
    %v749 = vmul.f32 %v725, %v746
    %v750 = vlaneseq
    %v751 = vshrl.u32 %v750, 7
    %v752 = vsub.s32 2, %v751
    %v753 = vrot.slane %v92, %v752
    %v754 = vmul.f32 %v747, %v753
    %v755 = vmul.f32 %v748, %v753
    %v756 = vmul.f32 %v749, %v753
    %v757 = vlaneseq
    %v758 = vshrl.u32 %v757, 7
    %v759 = vsub.s32 3, %v758
    %v760 = vrot.slane %v92, %v759
    %v761 = vadd.f32 %v754, %v760
    %v762 = vadd.f32 %v755, %v760
    %v763 = vadd.f32 %v756, %v760
    %v764 = vld [vmem:[%s6] sm:$0xff]
    %v765 = vld [vmem:[%s6 + $0x8] sm:$0xff]
    %v766 = vld [vmem:[%s6 + $0x10] sm:$0xff]
    %v767 = vld [vmem:[%s6 + $0x18] sm:$0xff]
    %v768 = vlaneseq
    %v769 = vshrl.u32 %v768, 7
    %v770 = vsub.s32 4, %v769
    %v771 = vrot.slane %v92, %v770
    %v773 = vsel %vm222, %v761, 0
    %v776 = vsel %vm222, %v762, 0
    %v779 = vsel %vm222, %v763, 0
    %781 = vmatprep.subr.mxu0 0.0
    %782 = vmatpush1.msra.mxu0 %v764
    %783 = vmatprep.subr.mxu0 0.0
    %784 = vmatpush1.msra.mxu0 %v765
    %785 = vmatprep.subr.mxu0 0.0
    %786 = vmatpush1.msra.mxu0 %v766
    %787 = vmatprep.subr.mxu0 0.0
    %788 = vmatpush1.msra.mxu0 %v767
    %789 = vmatprep.subr.mxu0 0.0
    %790 = vmatpush1.msra.mxu0 0.0
    %791 = vmatprep.subr.mxu0 0.0
    %792 = vmatpush1.msra.mxu0 0.0
    %793 = vmatprep.subr.mxu0 0.0
    %794 = vmatpush1.msra.mxu0 0.0
    %795 = vmatprep.subr.mxu0 0.0
    %796 = vmatpush1.msra.mxu0 0.0
    %797 = vmatprep.subr.mxu0 0.0
    %798 = vmatpush1.msra.mxu0 0.0
    %799 = vmatprep.subr.mxu0 0.0
    %800 = vmatpush1.msra.mxu0 0.0
    %801 = vmatprep.subr.mxu0 0.0
    %802 = vmatpush1.msra.mxu0 0.0
    %803 = vmatprep.subr.mxu0 0.0
    %804 = vmatpush1.msra.mxu0 0.0
    %805 = vmatprep.subr.mxu0 0.0
    %806 = vmatpush1.msra.mxu0 0.0
    %807 = vmatprep.subr.mxu0 0.0
    %808 = vmatpush1.msra.mxu0 0.0
    %809 = vmatprep.subr.mxu0 0.0
    %810 = vmatpush1.msra.mxu0 0.0
    %811 = vmatprep.subr.mxu0 0.0
    %812 = vmatpush1.msra.mxu0 0.0
    %813 = vmatprep.subr.mxu0 0.0
    %814 = vmatpush1.msra.mxu0 0.0
    %815 = vmatprep.subr.mxu0 0.0
    %816 = vmatpush1.msra.mxu0 0.0
    %817 = vmatprep.subr.mxu0 0.0
    %818 = vmatpush1.msra.mxu0 0.0
    %819 = vmatprep.subr.mxu0 0.0
    %820 = vmatpush1.msra.mxu0 0.0
    %821 = vmatprep.subr.mxu0 0.0
    %822 = vmatpush1.msra.mxu0 0.0
    %823 = vmatprep.subr.mxu0 0.0
    %824 = vmatpush1.msra.mxu0 0.0
    %825 = vmatprep.subr.mxu0 0.0
    %826 = vmatpush1.msra.mxu0 0.0
    %827 = vmatprep.subr.mxu0 0.0
    %828 = vmatpush1.msra.mxu0 0.0
    %829 = vmatprep.subr.mxu0 0.0
    %830 = vmatpush1.msra.mxu0 0.0
    %831 = vmatprep.subr.mxu0 0.0
    %832 = vmatpush1.msra.mxu0 0.0
    %833 = vmatprep.subr.mxu0 0.0
    %834 = vmatpush1.msra.mxu0 0.0
    %835 = vmatprep.subr.mxu0 0.0
    %836 = vmatpush1.msra.mxu0 0.0
    %837 = vmatprep.subr.mxu0 0.0
    %838 = vmatpush1.msra.mxu0 0.0
    %839 = vmatprep.subr.mxu0 0.0
    %840 = vmatpush1.msra.mxu0 0.0
    %841 = vmatprep.subr.mxu0 0.0
    %842 = vmatpush1.msra.mxu0 0.0
    %843 = vmatprep.subr.mxu0 0.0
    %844 = vmatpush1.msra.mxu0 0.0
    %845 = vmatprep.mubr.f32.mxu0 0.0
    %846 = vmatmul.mubr.f32.gmra.mrb[0].mxu0 %v773
    %v847 = vpop.f32.mrb[0].mxu0
    %v848 = vadd.f32 %v771, %v847
    %v849 = vpop.f32.mrb[0].mxu0
    %850 = vmatprep.mubr.f32.mxu0 0.0
    %851 = vmatmul.mubr.f32.gmra.mrb[0].mxu0 %v776
    %v852 = vpop.f32.mrb[0].mxu0
    %v853 = vadd.f32 %v771, %v852
    %v854 = vpop.f32.mrb[0].mxu0
    %855 = vmatprep.mubr.f32.mxu0 0.0
    %856 = vmatmul.mubr.f32.gmra.mrb[0].mxu0 %v779
    %v857 = vpop.f32.mrb[0].mxu0
    %v858 = vadd.f32 %v771, %v857
    %v859 = vpop.f32.mrb[0].mxu0
    %860 = vdwg.mxu0
    %v861 = vmax.f32 %v848, 0.0
    %v862 = vmax.f32 %v853, 0.0
    %v863 = vmax.f32 %v858, 0.0
    %s864 = scalar_lea.vmem %s6, 32
    %v865 = vld [vmem:[%s864] sm:$0xff]
    %v866 = vld [vmem:[%s864 + $0x8] sm:$0xff]
    %v867 = vld [vmem:[%s864 + $0x10] sm:$0xff]
    %v868 = vld [vmem:[%s864 + $0x18] sm:$0xff]
    %v869 = vlaneseq
    %v870 = vshrl.u32 %v869, 7
    %v871 = vsub.s32 5, %v870
    %v872 = vrot.slane %v92, %v871
    %v874 = vsel %vm222, %v861, 0
    %v877 = vsel %vm222, %v862, 0
    %v880 = vsel %vm222, %v863, 0
    %882 = vmatprep.subr.mxu0 0.0
    %883 = vmatpush1.msra.mxu0 %v865
    %884 = vmatprep.subr.mxu0 0.0
    %885 = vmatpush1.msra.mxu0 %v866
    %886 = vmatprep.subr.mxu0 0.0
    %887 = vmatpush1.msra.mxu0 %v867
    %888 = vmatprep.subr.mxu0 0.0
    %889 = vmatpush1.msra.mxu0 %v868
    %890 = vmatprep.subr.mxu0 0.0
    %891 = vmatpush1.msra.mxu0 0.0
    %892 = vmatprep.subr.mxu0 0.0
    %893 = vmatpush1.msra.mxu0 0.0
    %894 = vmatprep.subr.mxu0 0.0
    %895 = vmatpush1.msra.mxu0 0.0
    %896 = vmatprep.subr.mxu0 0.0
    %897 = vmatpush1.msra.mxu0 0.0
    %898 = vmatprep.subr.mxu0 0.0
    %899 = vmatpush1.msra.mxu0 0.0
    %900 = vmatprep.subr.mxu0 0.0
    %901 = vmatpush1.msra.mxu0 0.0
    %902 = vmatprep.subr.mxu0 0.0
    %903 = vmatpush1.msra.mxu0 0.0
    %904 = vmatprep.subr.mxu0 0.0
    %905 = vmatpush1.msra.mxu0 0.0
    %906 = vmatprep.subr.mxu0 0.0
    %907 = vmatpush1.msra.mxu0 0.0
    %908 = vmatprep.subr.mxu0 0.0
    %909 = vmatpush1.msra.mxu0 0.0
    %910 = vmatprep.subr.mxu0 0.0
    %911 = vmatpush1.msra.mxu0 0.0
    %912 = vmatprep.subr.mxu0 0.0
    %913 = vmatpush1.msra.mxu0 0.0
    %914 = vmatprep.subr.mxu0 0.0
    %915 = vmatpush1.msra.mxu0 0.0
    %916 = vmatprep.subr.mxu0 0.0
    %917 = vmatpush1.msra.mxu0 0.0
    %918 = vmatprep.subr.mxu0 0.0
    %919 = vmatpush1.msra.mxu0 0.0
    %920 = vmatprep.subr.mxu0 0.0
    %921 = vmatpush1.msra.mxu0 0.0
    %922 = vmatprep.subr.mxu0 0.0
    %923 = vmatpush1.msra.mxu0 0.0
    %924 = vmatprep.subr.mxu0 0.0
    %925 = vmatpush1.msra.mxu0 0.0
    %926 = vmatprep.subr.mxu0 0.0
    %927 = vmatpush1.msra.mxu0 0.0
    %928 = vmatprep.subr.mxu0 0.0
    %929 = vmatpush1.msra.mxu0 0.0
    %930 = vmatprep.subr.mxu0 0.0
    %931 = vmatpush1.msra.mxu0 0.0
    %932 = vmatprep.subr.mxu0 0.0
    %933 = vmatpush1.msra.mxu0 0.0
    %934 = vmatprep.subr.mxu0 0.0
    %935 = vmatpush1.msra.mxu0 0.0
    %936 = vmatprep.subr.mxu0 0.0
    %937 = vmatpush1.msra.mxu0 0.0
    %938 = vmatprep.subr.mxu0 0.0
    %939 = vmatpush1.msra.mxu0 0.0
    %940 = vmatprep.subr.mxu0 0.0
    %941 = vmatpush1.msra.mxu0 0.0
    %942 = vmatprep.subr.mxu0 0.0
    %943 = vmatpush1.msra.mxu0 0.0
    %944 = vmatprep.subr.mxu0 0.0
    %945 = vmatpush1.msra.mxu0 0.0
    %946 = vmatprep.mubr.f32.mxu0 0.0
    %947 = vmatmul.mubr.f32.gmra.mrb[0].mxu0 %v874
    %v948 = vpop.f32.mrb[0].mxu0
    %v949 = vadd.f32 %v872, %v948
    %v950 = vpop.f32.mrb[0].mxu0
    %951 = vmatprep.mubr.f32.mxu0 0.0
    %952 = vmatmul.mubr.f32.gmra.mrb[0].mxu0 %v877
    %v953 = vpop.f32.mrb[0].mxu0
    %v954 = vadd.f32 %v872, %v953
    %v955 = vpop.f32.mrb[0].mxu0
    %956 = vmatprep.mubr.f32.mxu0 0.0
    %957 = vmatmul.mubr.f32.gmra.mrb[0].mxu0 %v880
    %v958 = vpop.f32.mrb[0].mxu0
    %v959 = vadd.f32 %v872, %v958
    %v960 = vpop.f32.mrb[0].mxu0
    %961 = vdwg.mxu0
    %v962 = vadd.f32 %v949, %v761
    %v963 = vadd.f32 %v954, %v762
    %v964 = vadd.f32 %v959, %v763
    %v965 = vsel %vm222, %v962, 0.0
    %966 = vadd.xlane.f32.xlu0 %v965
    %v967 = vpop.xlane.xlu0 %966
    %v968 = vsel %vm222, %v963, 0.0
    %969 = vadd.xlane.f32.xlu0 %v968
    %v970 = vpop.xlane.xlu0 %969
    %v971 = vsel %vm222, %v964, 0.0
    %972 = vadd.xlane.f32.xlu0 %v971
    %v973 = vpop.xlane.xlu0 %972
    %v974 = vmul.f32 %v967, %v719
    %v975 = vmul.f32 %v970, %v719
    %v976 = vmul.f32 %v973, %v719
    %v977 = vsub.f32 %v962, %v974
    %v978 = vsub.f32 %v963, %v975
    %v979 = vsub.f32 %v964, %v976
    %v980 = vmul.f32 %v977, %v977
    %v981 = vmul.f32 %v978, %v978
    %v982 = vmul.f32 %v979, %v979
    %v983 = vsel %vm222, %v980, 0.0
    %984 = vadd.xlane.f32.xlu0 %v983
    %v985 = vpop.xlane.xlu0 %984
    %v986 = vsel %vm222, %v981, 0.0
    %987 = vadd.xlane.f32.xlu0 %v986
    %v988 = vpop.xlane.xlu0 %987
    %v989 = vsel %vm222, %v982, 0.0
    %990 = vadd.xlane.f32.xlu0 %v989
    %v991 = vpop.xlane.xlu0 %990
    %v992 = vmul.f32 %v985, %v719
    %v993 = vmul.f32 %v988, %v719
    %v994 = vmul.f32 %v991, %v719
    %v995 = vadd.f32 %v992, 1e-05
    %v996 = vadd.f32 %v993, 1e-05
    %v997 = vadd.f32 %v994, 1e-05
    %v998 = vrsqrt.pop %v995
    %v999 = vrsqrt.pop %v996
    %v1000 = vrsqrt.pop %v997
    %v1001 = vmul.f32 %v977, %v998
    %v1002 = vmul.f32 %v978, %v999
    %v1003 = vmul.f32 %v979, %v1000
    %v1004 = vlaneseq
    %v1005 = vshrl.u32 %v1004, 7
    %v1006 = vsub.s32 6, %v1005
    %v1007 = vrot.slane %v92, %v1006
    %v1008 = vmul.f32 %v1001, %v1007
    %v1009 = vmul.f32 %v1002, %v1007
    %v1010 = vmul.f32 %v1003, %v1007
    %v1011 = vlaneseq
    %v1012 = vshrl.u32 %v1011, 7
    %v1013 = vsub.s32 7, %v1012
    %v1014 = vrot.slane %v92, %v1013
    %v1015 = vadd.f32 %v1008, %v1014
    %v1016 = vadd.f32 %v1009, %v1014
    %v1017 = vadd.f32 %v1010, %v1014
    %v1018 = vmax.f32 %v1015, 0.0
    %v1019 = vmax.f32 %v1016, 0.0
    %v1020 = vmax.f32 %v1017, 0.0
    %s1021 = scalar_lea.vmem %s6, 64
    %v1022 = vld [vmem:[%s1021] sm:$0xff]
    %v1023 = vld [vmem:[%s1021 + $0x8] sm:$0xff]
    %v1024 = vld [vmem:[%s1021 + $0x10] sm:$0xff]
    %v1025 = vld [vmem:[%s1021 + $0x18] sm:$0xff]
    %v1026 = vlaneseq
    %v1027 = vshrl.u32 %v1026, 7
    %v1028 = vsub.s32 0, %v1027
    %v1029 = vrot.slane %v93, %v1028
    %v1031 = vsel %vm222, %v1018, 0
    %v1034 = vsel %vm222, %v1019, 0
    %v1037 = vsel %vm222, %v1020, 0
    %1039 = vmatprep.subr.mxu0 0.0
    %1040 = vmatpush1.msra.mxu0 %v1022
    %1041 = vmatprep.subr.mxu0 0.0
    %1042 = vmatpush1.msra.mxu0 %v1023
    %1043 = vmatprep.subr.mxu0 0.0
    %1044 = vmatpush1.msra.mxu0 %v1024
    %1045 = vmatprep.subr.mxu0 0.0
    %1046 = vmatpush1.msra.mxu0 %v1025
    %1047 = vmatprep.subr.mxu0 0.0
    %1048 = vmatpush1.msra.mxu0 0.0
    %1049 = vmatprep.subr.mxu0 0.0
    %1050 = vmatpush1.msra.mxu0 0.0
    %1051 = vmatprep.subr.mxu0 0.0
    %1052 = vmatpush1.msra.mxu0 0.0
    %1053 = vmatprep.subr.mxu0 0.0
    %1054 = vmatpush1.msra.mxu0 0.0
    %1055 = vmatprep.subr.mxu0 0.0
    %1056 = vmatpush1.msra.mxu0 0.0
    %1057 = vmatprep.subr.mxu0 0.0
    %1058 = vmatpush1.msra.mxu0 0.0
    %1059 = vmatprep.subr.mxu0 0.0
    %1060 = vmatpush1.msra.mxu0 0.0
    %1061 = vmatprep.subr.mxu0 0.0
    %1062 = vmatpush1.msra.mxu0 0.0
    %1063 = vmatprep.subr.mxu0 0.0
    %1064 = vmatpush1.msra.mxu0 0.0
    %1065 = vmatprep.subr.mxu0 0.0
    %1066 = vmatpush1.msra.mxu0 0.0
    %1067 = vmatprep.subr.mxu0 0.0
    %1068 = vmatpush1.msra.mxu0 0.0
    %1069 = vmatprep.subr.mxu0 0.0
    %1070 = vmatpush1.msra.mxu0 0.0
    %1071 = vmatprep.subr.mxu0 0.0
    %1072 = vmatpush1.msra.mxu0 0.0
    %1073 = vmatprep.subr.mxu0 0.0
    %1074 = vmatpush1.msra.mxu0 0.0
    %1075 = vmatprep.subr.mxu0 0.0
    %1076 = vmatpush1.msra.mxu0 0.0
    %1077 = vmatprep.subr.mxu0 0.0
    %1078 = vmatpush1.msra.mxu0 0.0
    %1079 = vmatprep.subr.mxu0 0.0
    %1080 = vmatpush1.msra.mxu0 0.0
    %1081 = vmatprep.subr.mxu0 0.0
    %1082 = vmatpush1.msra.mxu0 0.0
    %1083 = vmatprep.subr.mxu0 0.0
    %1084 = vmatpush1.msra.mxu0 0.0
    %1085 = vmatprep.subr.mxu0 0.0
    %1086 = vmatpush1.msra.mxu0 0.0
    %1087 = vmatprep.subr.mxu0 0.0
    %1088 = vmatpush1.msra.mxu0 0.0
    %1089 = vmatprep.subr.mxu0 0.0
    %1090 = vmatpush1.msra.mxu0 0.0
    %1091 = vmatprep.subr.mxu0 0.0
    %1092 = vmatpush1.msra.mxu0 0.0
    %1093 = vmatprep.subr.mxu0 0.0
    %1094 = vmatpush1.msra.mxu0 0.0
    %1095 = vmatprep.subr.mxu0 0.0
    %1096 = vmatpush1.msra.mxu0 0.0
    %1097 = vmatprep.subr.mxu0 0.0
    %1098 = vmatpush1.msra.mxu0 0.0
    %1099 = vmatprep.subr.mxu0 0.0
    %1100 = vmatpush1.msra.mxu0 0.0
    %1101 = vmatprep.subr.mxu0 0.0
    %1102 = vmatpush1.msra.mxu0 0.0
    %1103 = vmatprep.mubr.f32.mxu0 0.0
    %1104 = vmatmul.mubr.f32.gmra.mrb[0].mxu0 %v1031
    %v1105 = vpop.f32.mrb[0].mxu0
    %v1106 = vadd.f32 %v1029, %v1105
    %v1107 = vpop.f32.mrb[0].mxu0
    %1108 = vmatprep.mubr.f32.mxu0 0.0
    %1109 = vmatmul.mubr.f32.gmra.mrb[0].mxu0 %v1034
    %v1110 = vpop.f32.mrb[0].mxu0
    %v1111 = vadd.f32 %v1029, %v1110
    %v1112 = vpop.f32.mrb[0].mxu0
    %1113 = vmatprep.mubr.f32.mxu0 0.0
    %1114 = vmatmul.mubr.f32.gmra.mrb[0].mxu0 %v1037
    %v1115 = vpop.f32.mrb[0].mxu0
    %v1116 = vadd.f32 %v1029, %v1115
    %v1117 = vpop.f32.mrb[0].mxu0
    %1118 = vdwg.mxu0
    %v1119 = vmax.f32 %v1106, 0.0
    %v1120 = vmax.f32 %v1111, 0.0
    %v1121 = vmax.f32 %v1116, 0.0
    %v1122 = vld [vmem:[%s8] sm:$0xff]
    %v1123 = vld [vmem:[%s8 + $0x8] sm:$0xff]
    %v1124 = vld [vmem:[%s8 + $0x10] sm:$0xff]
    %v1125 = vld [vmem:[%s8 + $0x18] sm:$0xff]
    %v1126 = vld [vmem:[%s9] sm:$0x1]
    %v1128 = vlaneseq
    %v1129 = vshrl.u32 %v1128, 7
    %v1130 = vsub.s32 0, %v1129
    %v1131 = vrot.slane %v1126, %v1130
    %v1134 = vsel %vm222, %v1119, 0
    %v1137 = vsel %vm222, %v1120, 0
    %v1140 = vsel %vm222, %v1121, 0
    %1142 = vmatprep.subr.mxu0 0.0
    %1143 = vmatpush1.msra.mxu0 %v1122
    %1144 = vmatprep.subr.mxu0 0.0
    %1145 = vmatpush1.msra.mxu0 %v1123
    %1146 = vmatprep.subr.mxu0 0.0
    %1147 = vmatpush1.msra.mxu0 %v1124
    %1148 = vmatprep.subr.mxu0 0.0
    %1149 = vmatpush1.msra.mxu0 %v1125
    %1150 = vmatprep.subr.mxu0 0.0
    %1151 = vmatpush1.msra.mxu0 0.0
    %1152 = vmatprep.subr.mxu0 0.0
    %1153 = vmatpush1.msra.mxu0 0.0
    %1154 = vmatprep.subr.mxu0 0.0
    %1155 = vmatpush1.msra.mxu0 0.0
    %1156 = vmatprep.subr.mxu0 0.0
    %1157 = vmatpush1.msra.mxu0 0.0
    %1158 = vmatprep.subr.mxu0 0.0
    %1159 = vmatpush1.msra.mxu0 0.0
    %1160 = vmatprep.subr.mxu0 0.0
    %1161 = vmatpush1.msra.mxu0 0.0
    %1162 = vmatprep.subr.mxu0 0.0
    %1163 = vmatpush1.msra.mxu0 0.0
    %1164 = vmatprep.subr.mxu0 0.0
    %1165 = vmatpush1.msra.mxu0 0.0
    %1166 = vmatprep.subr.mxu0 0.0
    %1167 = vmatpush1.msra.mxu0 0.0
    %1168 = vmatprep.subr.mxu0 0.0
    %1169 = vmatpush1.msra.mxu0 0.0
    %1170 = vmatprep.subr.mxu0 0.0
    %1171 = vmatpush1.msra.mxu0 0.0
    %1172 = vmatprep.subr.mxu0 0.0
    %1173 = vmatpush1.msra.mxu0 0.0
    %1174 = vmatprep.subr.mxu0 0.0
    %1175 = vmatpush1.msra.mxu0 0.0
    %1176 = vmatprep.subr.mxu0 0.0
    %1177 = vmatpush1.msra.mxu0 0.0
    %1178 = vmatprep.subr.mxu0 0.0
    %1179 = vmatpush1.msra.mxu0 0.0
    %1180 = vmatprep.subr.mxu0 0.0
    %1181 = vmatpush1.msra.mxu0 0.0
    %1182 = vmatprep.subr.mxu0 0.0
    %1183 = vmatpush1.msra.mxu0 0.0
    %1184 = vmatprep.subr.mxu0 0.0
    %1185 = vmatpush1.msra.mxu0 0.0
    %1186 = vmatprep.subr.mxu0 0.0
    %1187 = vmatpush1.msra.mxu0 0.0
    %1188 = vmatprep.subr.mxu0 0.0
    %1189 = vmatpush1.msra.mxu0 0.0
    %1190 = vmatprep.subr.mxu0 0.0
    %1191 = vmatpush1.msra.mxu0 0.0
    %1192 = vmatprep.subr.mxu0 0.0
    %1193 = vmatpush1.msra.mxu0 0.0
    %1194 = vmatprep.subr.mxu0 0.0
    %1195 = vmatpush1.msra.mxu0 0.0
    %1196 = vmatprep.subr.mxu0 0.0
    %1197 = vmatpush1.msra.mxu0 0.0
    %1198 = vmatprep.subr.mxu0 0.0
    %1199 = vmatpush1.msra.mxu0 0.0
    %1200 = vmatprep.subr.mxu0 0.0
    %1201 = vmatpush1.msra.mxu0 0.0
    %1202 = vmatprep.subr.mxu0 0.0
    %1203 = vmatpush1.msra.mxu0 0.0
    %1204 = vmatprep.subr.mxu0 0.0
    %1205 = vmatpush1.msra.mxu0 0.0
    %1206 = vmatprep.mubr.f32.mxu0 0.0
    %1207 = vmatmul.mubr.f32.gmra.mrb[0].mxu0 %v1134
    %v1208 = vpop.f32.mrb[0].mxu0
    %v1209 = vadd.f32 %v1131, %v1208
    %v1210 = vpop.f32.mrb[0].mxu0
    %1211 = vmatprep.mubr.f32.mxu0 0.0
    %1212 = vmatmul.mubr.f32.gmra.mrb[0].mxu0 %v1137
    %v1213 = vpop.f32.mrb[0].mxu0
    %v1214 = vadd.f32 %v1131, %v1213
    %v1215 = vpop.f32.mrb[0].mxu0
    %1216 = vmatprep.mubr.f32.mxu0 0.0
    %1217 = vmatmul.mubr.f32.gmra.mrb[0].mxu0 %v1140
    %v1218 = vpop.f32.mrb[0].mxu0
    %v1219 = vadd.f32 %v1131, %v1218
    %v1220 = vpop.f32.mrb[0].mxu0
    %1221 = vdwg.mxu0
    %1222 = vst [vmem:[#allocation10] sm:$0xff] %v1209
    %1223 = vst [vmem:[#allocation10 + $0x8] sm:$0xff] %v1214
    %1224 = vst [vmem:[#allocation10 + $0x10] sm:$0xff] %v1219
    // Predicated region
    $region58: #{tpu_custom_call.1} parent=1 // pred_check
      _
    $region59: #{tpu_custom_call.1} parent=1 // pred_check_branch
      %1226 = sbr.rel (0) target = $region61
    $region60: #{tpu_custom_call.1} parent=1 // pred_region
      %s1228 = ssub.s32 384, 384
      %1229 = vsyncadd [#allocation4], %s1228
      %s1230 = sshll.u32 [#allocation10], 4
      %s1231 = int_to_ptr.vmem [resolvable:$true] %s1230
      %1236 = dma.vmem_to_hbm [thread:$0]  %s1231, 384, %s10, [#allocation4], 128, 128, 8
    $region61: #{tpu_custom_call.1} parent=1 // pred_fallthru
      _
    // Predicated region
    $region62: #{tpu_custom_call.1} parent=1 // pred_check
      _
    $region63: #{tpu_custom_call.1} parent=1 // pred_check_branch
      %1238 = sbr.rel (0) target = $region65
    $region64: #{tpu_custom_call.1} parent=1 // pred_region
      %1239 = dma.done [#allocation4], 384
    $region65: #{tpu_custom_call.1} parent=1 // pred_fallthru
      _
    %1240 = vsyncpa [#allocation3], 1
    %1241 = vsyncpa [#allocation6], 1
    %1242 = vsyncpa [#allocation9], 1
    %1243 = vsyncpa [#allocation4], 1

</llo_original>
